<compile_context>
chip_gen: v5e
topology: v5e:2x2
jax: 0.10.0
libtpu: 0.0.40
codegen_flags: <defaults>
</compile_context>

<pallas_src>
import functools
import math

import jax
import jax.numpy as jnp
from jax import lax
from jax.experimental import pallas as pl
from jax.experimental.pallas import tpu as pltpu


COMPUTE_DTYPE = jnp.bfloat16     # MXU operand dtype; accumulation / epilogues in f32
LN_EPS = 1e-5
NEG_INF = -1e30

_PARALLEL_1D = pltpu.CompilerParams(dimension_semantics=("parallel",))


# ----------------------------------------------------------------------------
# helpers
# ----------------------------------------------------------------------------

def _round_up(x, m):
    return (x + m - 1) // m * m


def _row_plan(n, target):
    """Pick a row block (multiple of 32, TPU-tile safe for any dtype) and padded row count."""
    n_pad = _round_up(n, 32)
    target = max(32, min(target, n_pad))
    rb = 32
    for cand in range(target - target % 32, 31, -32):
        if n_pad % cand == 0:
            rb = cand
            break
    return rb, n_pad


def _pad_rows(x, n_pad):
    n = x.shape[0]
    if n_pad == n:
        return x
    return jnp.pad(x, ((0, n_pad - n),) + ((0, 0),) * (x.ndim - 1))


# ----------------------------------------------------------------------------
# Pallas kernels
# ----------------------------------------------------------------------------

def linear_kernel(x_ref, w_ref, o_ref):
    # bias-free projection: (rb, In) @ (In, Out) -> (rb, Out)
    y = jnp.dot(x_ref[...], w_ref[...], preferred_element_type=jnp.float32)
    o_ref[...] = y.astype(o_ref.dtype)


def matmul_residual_ln_kernel(x_ref, w_ref, res_ref, g_ref, b_ref, o_ref):
    # out = LayerNorm(res + x @ w)   (proj_out + residual + norm1, fused)
    y = jnp.dot(x_ref[...], w_ref[...], preferred_element_type=jnp.float32)
    y = y + res_ref[...].astype(jnp.float32)
    mu = jnp.mean(y, axis=-1, keepdims=True)
    var = jnp.mean(jnp.square(y - mu), axis=-1, keepdims=True)
    yn = (y - mu) * lax.rsqrt(var + LN_EPS)
    o_ref[...] = (yn * g_ref[...] + b_ref[...]).astype(o_ref.dtype)


def ffn_residual_ln_kernel(x_ref, w1_ref, b1_ref, w2_ref, b2_ref, g_ref, b_ref, o_ref):
    # out = LayerNorm(x + relu(x @ W1 + b1) @ W2 + b2) ; inner activation stays in VMEM
    x = x_ref[...]
    u = jnp.dot(x, w1_ref[...], preferred_element_type=jnp.float32) + b1_ref[...]
    u = jnp.maximum(u, 0.0)
    y = jnp.dot(u.astype(w2_ref.dtype), w2_ref[...],
                preferred_element_type=jnp.float32) + b2_ref[...]
    y = y + x.astype(jnp.float32)
    mu = jnp.mean(y, axis=-1, keepdims=True)
    var = jnp.mean(jnp.square(y - mu), axis=-1, keepdims=True)
    yn = (y - mu) * lax.rsqrt(var + LN_EPS)
    o_ref[...] = (yn * g_ref[...] + b_ref[...]).astype(o_ref.dtype)


def rband_kernel(q_ref, pe_ref, o_ref, *, nheads, head_dim, seq):
    # per batch block: r_band[h] = Q_h @ key_pe  -> rows [h*seq, (h+1)*seq)
    q = q_ref[0]                     # (M, K*D) bf16
    pe = pe_ref[...]                 # (D, L)   bf16
    for h in range(nheads):
        qh = q[:, h * head_dim:(h + 1) * head_dim]
        o_ref[0, h * seq:(h + 1) * seq, :] = jnp.dot(
            qh, pe, preferred_element_type=jnp.float32)


def attention_kernel(q_ref, kv_ref, r_ref, o_ref, *, nheads, head_dim, span):
    # Fused banded attention for all heads of one batch element.
    # q: (1, M, K*D) bf16 ; kv: (1, Mem, 2*K*D) bf16 ; r: (1, K*M, Mem) f32
    q = q_ref[0]
    kv = kv_ref[0]
    r = r_ref[0]
    M = q.shape[0]
    Mem = kv.shape[0]
    inv_sqrt_d = 1.0 / math.sqrt(head_dim)

    # validity mask: query i attends keys j with 0 <= j - i < span
    row = lax.broadcasted_iota(jnp.int32, (M, Mem), 0)
    col = lax.broadcasted_iota(jnp.int32, (M, Mem), 1)
    valid = (col >= row) & (col < row + span)

    for h in range(nheads):
        qh = q[:, h * head_dim:(h + 1) * head_dim]
        kh = kv[:, h * head_dim:(h + 1) * head_dim]
        vh = kv[:, (nheads + h) * head_dim:(nheads + h + 1) * head_dim]

        s = jnp.dot(qh, kh.T, preferred_element_type=jnp.float32)      # (M, Mem)
        s = (s + r[h * M:(h + 1) * M, :]) * inv_sqrt_d
        s = jnp.where(valid, s, NEG_INF)

        m = jnp.max(s, axis=-1, keepdims=True)
        e = jnp.exp(s - m)
        denom = jnp.sum(e, axis=-1, keepdims=True)
        p = e * pl.reciprocal(denom, approx=True)                       # zeros off-band

        ctx = jnp.dot(p.astype(vh.dtype), vh, preferred_element_type=jnp.float32)
        o_ref[0, :, h * head_dim:(h + 1) * head_dim] = ctx.astype(o_ref.dtype)


def out_head_kernel(x_ref, w_ref, b_ref, o_ref):
    # final linear + log_softmax over vocab
    logits = jnp.dot(x_ref[...], w_ref[...], preferred_element_type=jnp.float32)
    logits = logits + b_ref[...]
    z = logits - jnp.max(logits, axis=-1, keepdims=True)
    lse = jnp.log(jnp.sum(jnp.exp(z), axis=-1, keepdims=True))
    o_ref[...] = z - lse


# ----------------------------------------------------------------------------
# Pallas wrappers
# ----------------------------------------------------------------------------

def pallas_linear(x, w, *, row_block=256):
    n, d_in = x.shape
    d_out = w.shape[1]
    rb, n_pad = _row_plan(n, row_block)
    xp = _pad_rows(x, n_pad)
    y = pl.pallas_call(
        linear_kernel,
        out_shape=jax.ShapeDtypeStruct((n_pad, d_out), COMPUTE_DTYPE),
        grid=(n_pad // rb,),
        in_specs=[pl.BlockSpec((rb, d_in), lambda i: (i, 0)),
                  pl.BlockSpec((d_in, d_out), lambda i: (0, 0))],
        out_specs=pl.BlockSpec((rb, d_out), lambda i: (i, 0)),
        compiler_params=_PARALLEL_1D,
    )(xp, w)
    return y[:n]


def pallas_matmul_residual_ln(x, w, res, g, b, *, row_block=256):
    n, d_in = x.shape
    d_out = w.shape[1]
    rb, n_pad = _row_plan(n, row_block)
    xp = _pad_rows(x, n_pad)
    rp = _pad_rows(res, n_pad)
    y = pl.pallas_call(
        matmul_residual_ln_kernel,
        out_shape=jax.ShapeDtypeStruct((n_pad, d_out), COMPUTE_DTYPE),
        grid=(n_pad // rb,),
        in_specs=[pl.BlockSpec((rb, d_in), lambda i: (i, 0)),
                  pl.BlockSpec((d_in, d_out), lambda i: (0, 0)),
                  pl.BlockSpec((rb, d_out), lambda i: (i, 0)),
                  pl.BlockSpec((1, d_out), lambda i: (0, 0)),
                  pl.BlockSpec((1, d_out), lambda i: (0, 0))],
        out_specs=pl.BlockSpec((rb, d_out), lambda i: (i, 0)),
        compiler_params=_PARALLEL_1D,
    )(xp, w, rp, g, b)
    return y[:n]


def pallas_ffn_residual_ln(x, w1, b1, w2, b2, g, b, *, row_block=256):
    n, h = x.shape
    f = w1.shape[1]
    rb, n_pad = _row_plan(n, row_block)
    xp = _pad_rows(x, n_pad)
    y = pl.pallas_call(
        ffn_residual_ln_kernel,
        out_shape=jax.ShapeDtypeStruct((n_pad, h), COMPUTE_DTYPE),
        grid=(n_pad // rb,),
        in_specs=[pl.BlockSpec((rb, h), lambda i: (i, 0)),
                  pl.BlockSpec((h, f), lambda i: (0, 0)),
                  pl.BlockSpec((1, f), lambda i: (0, 0)),
                  pl.BlockSpec((f, h), lambda i: (0, 0)),
                  pl.BlockSpec((1, h), lambda i: (0, 0)),
                  pl.BlockSpec((1, h), lambda i: (0, 0)),
                  pl.BlockSpec((1, h), lambda i: (0, 0))],
        out_specs=pl.BlockSpec((rb, h), lambda i: (i, 0)),
        compiler_params=_PARALLEL_1D,
    )(xp, w1, b1, w2, b2, g, b)
    return y[:n]


def pallas_rband(q_packed, key_pe, *, nheads, head_dim):
    # q_packed: (B, M, K*D) bf16 ; key_pe: (D, L) bf16  ->  (B*K, M, L) f32
    B, M, KD = q_packed.shape
    L = key_pe.shape[1]
    kern = functools.partial(rband_kernel, nheads=nheads, head_dim=head_dim, seq=M)
    out = pl.pallas_call(
        kern,
        out_shape=jax.ShapeDtypeStruct((B, nheads * M, L), jnp.float32),
        grid=(B,),
        in_specs=[pl.BlockSpec((1, M, KD), lambda b: (b, 0, 0)),
                  pl.BlockSpec((head_dim, L), lambda b: (0, 0))],
        out_specs=pl.BlockSpec((1, nheads * M, L), lambda b: (b, 0, 0)),
        compiler_params=_PARALLEL_1D,
    )(q_packed, key_pe)
    return out.reshape(B * nheads, M, L)


def pallas_attention(q_packed, kv_packed, r_full, *, nheads, head_dim, span):
    # q: (B, M, K*D), kv: (B, Mem, 2*K*D), r_full: (B, K*M, Mem) -> ctx (B, M, K*D)
    B, M, KD = q_packed.shape
    Mem = kv_packed.shape[1]
    kern = functools.partial(attention_kernel, nheads=nheads, head_dim=head_dim,
                             span=span)
    out = pl.pallas_call(
        kern,
        out_shape=jax.ShapeDtypeStruct((B, M, KD), COMPUTE_DTYPE),
        grid=(B,),
        in_specs=[pl.BlockSpec((1, M, KD), lambda b: (b, 0, 0)),
                  pl.BlockSpec((1, Mem, 2 * KD), lambda b: (b, 0, 0)),
                  pl.BlockSpec((1, nheads * M, Mem), lambda b: (b, 0, 0))],
        out_specs=pl.BlockSpec((1, M, KD), lambda b: (b, 0, 0)),
        compiler_params=_PARALLEL_1D,
    )(q_packed, kv_packed, r_full)
    return out


def pallas_out_head(x, w, b, *, row_block=256):
    # TODO(synk): for very large vocab, tile the V axis with an online log-sum-exp
    # (running max + rescaled sum) so the (H, V) weight never has to be VMEM-resident.
    n, h = x.shape
    v = w.shape[1]
    rb, n_pad = _row_plan(n, row_block)
    xp = _pad_rows(x, n_pad)
    y = pl.pallas_call(
        out_head_kernel,
        out_shape=jax.ShapeDtypeStruct((n_pad, v), jnp.float32),
        grid=(n_pad // rb,),
        in_specs=[pl.BlockSpec((rb, h), lambda i: (i, 0)),
                  pl.BlockSpec((h, v), lambda i: (0, 0)),
                  pl.BlockSpec((1, v), lambda i: (0, 0))],
        out_specs=pl.BlockSpec((rb, v), lambda i: (i, 0)),
        compiler_params=_PARALLEL_1D,
    )(xp, w, b)
    return y[:n]


# ----------------------------------------------------------------------------
# band -> full-key-space shear for the (small) q @ key_pe term.
# Same pad+reshape trick as the reference model's skew(), applied only here.
# ----------------------------------------------------------------------------

def skew_band(r_band):
    # r_band: (G, M, L) -> (G, M, L+M) with out[g, i, i+c] = r_band[g, i, c], 0 elsewhere
    G, M, L = r_band.shape
    rp = jnp.pad(r_band, ((0, 0), (0, 0), (0, M + 1)))
    rf = rp.reshape(G, M * (L + M + 1))[:, :M * (L + M)]
    return rf.reshape(G, M, L + M)


# ----------------------------------------------------------------------------
# Model forward
# ----------------------------------------------------------------------------

def multihead_seq_attention(lp, key_pe, h, h_memory, cfg):
    B, M, H = h.shape
    Mem = h_memory.shape[1]
    K, D, L = cfg["nheads"], cfg["head_dim"], cfg["attn_lim"]
    assert Mem == L + M, "memory length must equal attn_lim + seq (adapt_span disabled)"

    # bias-free projections in packed (rows, K*D) layout
    q = pallas_linear(h.reshape(B * M, H), lp["Wq"]).reshape(B, M, K * D)
    kv = pallas_linear(h_memory.reshape(B * Mem, H), lp["Wkv"]).reshape(B, Mem, 2 * K * D)

    # relative-position term q @ key_pe (band space), sheared into key space
    r_band = pallas_rband(q, key_pe, nheads=K, head_dim=D)              # (B*K, M, L) f32
    r_full = skew_band(r_band).reshape(B, K * M, Mem)                   # (B, K*M, Mem) f32

    ctx = pallas_attention(q, kv, r_full, nheads=K, head_dim=D, span=L)  # (B, M, K*D)
    return ctx.reshape(B * M, K * D)


def transformer_seq_layer(lp, key_pe, h, h_prev, cfg):
    # pre_norm = False branch of TransformerSeqLayer
    B, M, H = h.shape
    h_memory = jnp.concatenate([h_prev, h], axis=1)                     # (B, L+M, H)
    ctx = multihead_seq_attention(lp, key_pe, h, h_memory, cfg)         # (B*M, K*D)
    # proj_out + residual + norm1 fused
    h2 = pallas_matmul_residual_ln(ctx, lp["Wo"], h.reshape(B * M, H),
                                   lp["ln1_g"], lp["ln1_b"])
    # FF (W1 + relu + W2) + residual + norm2 fused
    out = pallas_ffn_residual_ln(h2, lp["W1"], lp["b1"], lp["W2"], lp["b2"],
                                 lp["ln2_g"], lp["ln2_b"])
    return out.reshape(B, M, H)


def transformer_seq_forward(params, x_tokens, h_prev_list, cfg):
    B, M = x_tokens.shape
    H, L = cfg["hid_sz"], cfg["attn_lim"]

    # TODO(synk): embedding gather kept as plain JAX indexing (no matmul hot path).
    h = params["emb"][x_tokens].astype(COMPUTE_DTYPE)                   # (B, M, H)

    h_cache = []
    aux_loss = 0.0
    for li in range(cfg["nlayers"]):
        h_prev = h_prev_list[li].astype(COMPUTE_DTYPE)
        cache_size = L   # adapt_span disabled -> cache size == attn_lim
        if cache_size > M:
            h_cache.append(
                jnp.concatenate([h_prev[:, -cache_size + M:, :], h], axis=1))
        else:
            h_cache.append(h[:, -cache_size:, :])
        h = transformer_seq_layer(params["layers"][li], params["key_pe"],
                                  h, h_prev, cfg)

    out = pallas_out_head(h.reshape(B * M, H), params["Wout"], params["bout"])
    out = out.reshape(B, M, cfg["vocab_sz"])
    return out, h_cache, aux_loss


# ----------------------------------------------------------------------------
# Deterministic parameter init (weights bf16, biases / LN params f32)
# ----------------------------------------------------------------------------

def init_params(key, cfg):
    H, V = cfg["hid_sz"], cfg["vocab_sz"]
    K, D, L = cfg["nheads"], cfg["head_dim"], cfg["attn_lim"]
    F, NL = cfg["inner_hid_sz"], cfg["nlayers"]

    def nrm(k, shape, scale, dtype=COMPUTE_DTYPE):
        return (scale * jax.random.normal(k, shape, dtype=jnp.float32)).astype(dtype)

    keys = jax.random.split(key, 4 + NL)
    params = {
        "emb": nrm(keys[0], (V, H), 0.1),
        "key_pe": nrm(keys[1], (D, L), 1.0 / math.sqrt(D)),   # shared across layers
        "Wout": nrm(keys[2], (H, V), 0.05),
        "bout": jnp.zeros((1, V), jnp.float32),
        "layers": [],
    }
    for li in range(NL):
        lk = jax.random.split(keys[4 + li], 6)
        wk = nrm(lk[1], (H, K * D), 0.05)
        wv = nrm(lk[2], (H, K * D), 0.05)
        params["layers"].append({
            "Wq": nrm(lk[0], (H, K * D), 0.05),
            "Wkv": jnp.concatenate([wk, wv], axis=1),          # fused K/V projection
            "Wo": nrm(lk[3], (K * D, H), 0.05),
            "ln1_g": jnp.ones((1, H), jnp.float32),
            "ln1_b": jnp.zeros((1, H), jnp.float32),
            "ln2_g": jnp.ones((1, H), jnp.float32),
            "ln2_b": jnp.zeros((1, H), jnp.float32),
            "W1": nrm(lk[4], (H, F), 0.05),
            "b1": jnp.zeros((1, F), jnp.float32),
            "W2": nrm(lk[5], (F, H), 0.05),
            "b2": jnp.zeros((1, H), jnp.float32),
        })
    return params


# ----------------------------------------------------------------------------

if __name__ == "__main__":
    cfg = dict(
        vocab_sz=64,
        hid_sz=32,
        nheads=2,
        head_dim=16,      # nheads * head_dim == hid_sz
        attn_lim=16,      # L (cache / span length)
        inner_hid_sz=48,
        nlayers=2,
        batch=2,
        seq=8,            # M
    )

    params = init_params(jax.random.PRNGKey(0), cfg)
    x = jax.random.randint(jax.random.PRNGKey(1),
                           (cfg["batch"], cfg["seq"]), 0, cfg["vocab_sz"],
                           dtype=jnp.int32)
    # init_hid_cache: zeros of shape (B, attn_lim, hid_sz) per layer
    h_prev = [jnp.zeros((cfg["batch"], cfg["attn_lim"], cfg["hid_sz"]), jnp.float32)
              for _ in range(cfg["nlayers"])]

    fwd = jax.jit(functools.partial(transformer_seq_forward, cfg=cfg))
    out, h_cache, aux_loss = fwd(params, x, h_prev)

    jax.block_until_ready(out)
    for c in h_cache:
        jax.block_until_ready(c)
    assert out.shape == (cfg["batch"], cfg["seq"], cfg["vocab_sz"])
    print("KERNEL_OK")
</pallas_src>

<mosaic_0001>
module attributes {stable_mosaic.version = 11 : i64} {
  func.func @linear_kernel(%arg0: i32, %arg1: memref<32x32xbf16, #tpu.memory_space<vmem>>, %arg2: memref<32x32xbf16, #tpu.memory_space<vmem>>, %arg3: memref<32x32xbf16, #tpu.memory_space<vmem>>) attributes {dimension_semantics = [#tpu.dimension_semantics<parallel>], iteration_bounds = array<i64: 1>, scalar_prefetch = 0 : i64, scratch_operands = 0 : i64, tpu.core_type = #tpu.core_type<tc>, window_params = [{transform_indices = @transform_0, window_bounds = array<i64: 32, 32>}, {pipeline_mode = #tpu.pipeline_mode<synchronous>, transform_indices = @transform_1, window_bounds = array<i64: 32, 32>}, {transform_indices = @transform_2, window_bounds = array<i64: 32, 32>}]} {
    %c0 = arith.constant 0 : index
    %c0_0 = arith.constant 0 : index
    %0 = vector.load %arg1[%c0, %c0_0] : memref<32x32xbf16, #tpu.memory_space<vmem>>, vector<32x32xbf16>
    %c0_1 = arith.constant 0 : index
    %c0_2 = arith.constant 0 : index
    %1 = vector.load %arg2[%c0_1, %c0_2] : memref<32x32xbf16, #tpu.memory_space<vmem>>, vector<32x32xbf16>
    %cst = arith.constant dense<0.000000e+00> : vector<32x32xf32>
    %2 = tpu.matmul %0, %1, %cst {dimension_numbers = #tpu.dot_dimension_numbers<[1], [0], [0], [1], [0, 0, 1, 1], [], []>} : vector<32x32xbf16>, vector<32x32xbf16>, vector<32x32xf32> -> vector<32x32xf32>
    %3 = arith.truncf %2 : vector<32x32xf32> to vector<32x32xbf16>
    %c0_3 = arith.constant 0 : index
    %c0_4 = arith.constant 0 : index
    %4 = vector.load %arg3[%c0_3, %c0_4] : memref<32x32xbf16, #tpu.memory_space<vmem>>, vector<32x32xbf16>
    tpu.vector_store %arg3[%c0_3, %c0_4], %3 {strides = array<i32>} : memref<32x32xbf16, #tpu.memory_space<vmem>>, vector<32x32xbf16>,
    return
  }
  func.func @transform_0(%arg0: i32) -> (i32, i32) {
    %c0_i32 = arith.constant 0 : i32
    %c0_i32_0 = arith.constant 0 : i32
    return %arg0, %c0_i32 : i32, i32
  }
  func.func @transform_1(%arg0: i32) -> (i32, i32) {
    %c0_i32 = arith.constant 0 : i32
    %c0_i32_0 = arith.constant 0 : i32
    %c0_i32_1 = arith.constant 0 : i32
    return %c0_i32, %c0_i32_0 : i32, i32
  }
  func.func @transform_2(%arg0: i32) -> (i32, i32) {
    %c0_i32 = arith.constant 0 : i32
    %c0_i32_0 = arith.constant 0 : i32
    return %arg0, %c0_i32 : i32, i32
  }
}

module attributes {stable_mosaic.version = 11 : i64} {
  func.func @rband_kernel(%arg0: i32, %arg1: memref<1x8x32xbf16, #tpu.memory_space<vmem>>, %arg2: memref<16x16xbf16, #tpu.memory_space<vmem>>, %arg3: memref<1x16x16xf32, #tpu.memory_space<vmem>>) attributes {dimension_semantics = [#tpu.dimension_semantics<parallel>], iteration_bounds = array<i64: 2>, scalar_prefetch = 0 : i64, scratch_operands = 0 : i64, tpu.core_type = #tpu.core_type<tc>, window_params = [{transform_indices = @transform_0, window_bounds = array<i64: 1, 8, 32>}, {pipeline_mode = #tpu.pipeline_mode<synchronous>, transform_indices = @transform_1, window_bounds = array<i64: 16, 16>}, {transform_indices = @transform_2, window_bounds = array<i64: 1, 16, 16>}]} {
    %c0 = arith.constant 0 : index
    %c0_0 = arith.constant 0 : index
    %c0_1 = arith.constant 0 : index
    %0 = vector.load %arg1[%c0, %c0_0, %c0_1] : memref<1x8x32xbf16, #tpu.memory_space<vmem>>, vector<1x8x32xbf16>
    %1 = vector.shape_cast %0 : vector<1x8x32xbf16> to vector<8x32xbf16>
    %c0_2 = arith.constant 0 : index
    %c0_3 = arith.constant 0 : index
    %2 = vector.load %arg2[%c0_2, %c0_3] : memref<16x16xbf16, #tpu.memory_space<vmem>>, vector<16x16xbf16>
    %3 = vector.extract_strided_slice %1 {offsets = [0, 0], sizes = [8, 16], strides = [1, 1]} : vector<8x32xbf16> to vector<8x16xbf16>
    %cst = arith.constant dense<0.000000e+00> : vector<8x16xf32>
    %4 = tpu.matmul %3, %2, %cst {dimension_numbers = #tpu.dot_dimension_numbers<[1], [0], [0], [1], [0, 0, 1, 1], [], []>} : vector<8x16xbf16>, vector<16x16xbf16>, vector<8x16xf32> -> vector<8x16xf32>
    %c0_4 = arith.constant 0 : index
    %c0_5 = arith.constant 0 : index
    %c0_6 = arith.constant 0 : index
    %5 = vector.load %arg3[%c0_4, %c0_5, %c0_6] : memref<1x16x16xf32, #tpu.memory_space<vmem>>, vector<1x8x16xf32>
    %6 = vector.shape_cast %5 : vector<1x8x16xf32> to vector<8x16xf32>
    %7 = vector.shape_cast %4 : vector<8x16xf32> to vector<1x8x16xf32>
    tpu.vector_store %arg3[%c0_4, %c0_5, %c0_6], %7 {strides = array<i32>} : memref<1x16x16xf32, #tpu.memory_space<vmem>>, vector<1x8x16xf32>,
    %8 = vector.extract_strided_slice %1 {offsets = [0, 16], sizes = [8, 16], strides = [1, 1]} : vector<8x32xbf16> to vector<8x16xbf16>
    %cst_7 = arith.constant dense<0.000000e+00> : vector<8x16xf32>
    %9 = tpu.matmul %8, %2, %cst_7 {dimension_numbers = #tpu.dot_dimension_numbers<[1], [0], [0], [1], [0, 0, 1, 1], [], []>} : vector<8x16xbf16>, vector<16x16xbf16>, vector<8x16xf32> -> vector<8x16xf32>
    %c0_8 = arith.constant 0 : index
    %c8 = arith.constant 8 : index
    %c0_9 = arith.constant 0 : index
    %10 = vector.load %arg3[%c0_8, %c8, %c0_9] : memref<1x16x16xf32, #tpu.memory_space<vmem>>, vector<1x8x16xf32>
    %11 = vector.shape_cast %10 : vector<1x8x16xf32> to vector<8x16xf32>
    %12 = vector.shape_cast %9 : vector<8x16xf32> to vector<1x8x16xf32>
    tpu.vector_store %arg3[%c0_8, %c8, %c0_9], %12 {strides = array<i32>} : memref<1x16x16xf32, #tpu.memory_space<vmem>>, vector<1x8x16xf32>,
    return
  }
  func.func @transform_0(%arg0: i32) -> (i32, i32, i32) {
    %c0_i32 = arith.constant 0 : i32
    %c0_i32_0 = arith.constant 0 : i32
    %c0_i32_1 = arith.constant 0 : i32
    return %arg0, %c0_i32, %c0_i32_0 : i32, i32, i32
  }
  func.func @transform_1(%arg0: i32) -> (i32, i32) {
    %c0_i32 = arith.constant 0 : i32
    %c0_i32_0 = arith.constant 0 : i32
    %c0_i32_1 = arith.constant 0 : i32
    return %c0_i32, %c0_i32_0 : i32, i32
  }
  func.func @transform_2(%arg0: i32) -> (i32, i32, i32) {
    %c0_i32 = arith.constant 0 : i32
    %c0_i32_0 = arith.constant 0 : i32
    %c0_i32_1 = arith.constant 0 : i32
    return %arg0, %c0_i32, %c0_i32_0 : i32, i32, i32
  }
}

module attributes {stable_mosaic.version = 11 : i64} {
  func.func @linear_kernel(%arg0: i32, %arg1: memref<64x32xbf16, #tpu.memory_space<vmem>>, %arg2: memref<32x64xbf16, #tpu.memory_space<vmem>>, %arg3: memref<64x64xbf16, #tpu.memory_space<vmem>>) attributes {dimension_semantics = [#tpu.dimension_semantics<parallel>], iteration_bounds = array<i64: 1>, scalar_prefetch = 0 : i64, scratch_operands = 0 : i64, tpu.core_type = #tpu.core_type<tc>, window_params = [{transform_indices = @transform_0, window_bounds = array<i64: 64, 32>}, {pipeline_mode = #tpu.pipeline_mode<synchronous>, transform_indices = @transform_1, window_bounds = array<i64: 32, 64>}, {transform_indices = @transform_2, window_bounds = array<i64: 64, 64>}]} {
    %c0 = arith.constant 0 : index
    %c0_0 = arith.constant 0 : index
    %0 = vector.load %arg1[%c0, %c0_0] : memref<64x32xbf16, #tpu.memory_space<vmem>>, vector<64x32xbf16>
    %c0_1 = arith.constant 0 : index
    %c0_2 = arith.constant 0 : index
    %1 = vector.load %arg2[%c0_1, %c0_2] : memref<32x64xbf16, #tpu.memory_space<vmem>>, vector<32x64xbf16>
    %cst = arith.constant dense<0.000000e+00> : vector<64x64xf32>
    %2 = tpu.matmul %0, %1, %cst {dimension_numbers = #tpu.dot_dimension_numbers<[1], [0], [0], [1], [0, 0, 1, 1], [], []>} : vector<64x32xbf16>, vector<32x64xbf16>, vector<64x64xf32> -> vector<64x64xf32>
    %3 = arith.truncf %2 : vector<64x64xf32> to vector<64x64xbf16>
    %c0_3 = arith.constant 0 : index
    %c0_4 = arith.constant 0 : index
    %4 = vector.load %arg3[%c0_3, %c0_4] : memref<64x64xbf16, #tpu.memory_space<vmem>>, vector<64x64xbf16>
    tpu.vector_store %arg3[%c0_3, %c0_4], %3 {strides = array<i32>} : memref<64x64xbf16, #tpu.memory_space<vmem>>, vector<64x64xbf16>,
    return
  }
  func.func @transform_0(%arg0: i32) -> (i32, i32) {
    %c0_i32 = arith.constant 0 : i32
    %c0_i32_0 = arith.constant 0 : i32
    return %arg0, %c0_i32 : i32, i32
  }
  func.func @transform_1(%arg0: i32) -> (i32, i32) {
    %c0_i32 = arith.constant 0 : i32
    %c0_i32_0 = arith.constant 0 : i32
    %c0_i32_1 = arith.constant 0 : i32
    return %c0_i32, %c0_i32_0 : i32, i32
  }
  func.func @transform_2(%arg0: i32) -> (i32, i32) {
    %c0_i32 = arith.constant 0 : i32
    %c0_i32_0 = arith.constant 0 : i32
    return %arg0, %c0_i32 : i32, i32
  }
}

module attributes {stable_mosaic.version = 11 : i64} {
  func.func @attention_kernel(%arg0: i32, %arg1: memref<1x8x32xbf16, #tpu.memory_space<vmem>>, %arg2: memref<1x24x64xbf16, #tpu.memory_space<vmem>>, %arg3: memref<1x16x24xf32, #tpu.memory_space<vmem>>, %arg4: memref<1x8x32xbf16, #tpu.memory_space<vmem>>) attributes {dimension_semantics = [#tpu.dimension_semantics<parallel>], iteration_bounds = array<i64: 2>, scalar_prefetch = 0 : i64, scratch_operands = 0 : i64, tpu.core_type = #tpu.core_type<tc>, window_params = [{transform_indices = @transform_0, window_bounds = array<i64: 1, 8, 32>}, {transform_indices = @transform_1, window_bounds = array<i64: 1, 24, 64>}, {transform_indices = @transform_2, window_bounds = array<i64: 1, 16, 24>}, {transform_indices = @transform_3, window_bounds = array<i64: 1, 8, 32>}]} {
    %c0 = arith.constant 0 : index
    %c0_0 = arith.constant 0 : index
    %c0_1 = arith.constant 0 : index
    %0 = vector.load %arg1[%c0, %c0_0, %c0_1] : memref<1x8x32xbf16, #tpu.memory_space<vmem>>, vector<1x8x32xbf16>
    %1 = vector.shape_cast %0 : vector<1x8x32xbf16> to vector<8x32xbf16>
    %c0_2 = arith.constant 0 : index
    %c0_3 = arith.constant 0 : index
    %c0_4 = arith.constant 0 : index
    %2 = vector.load %arg2[%c0_2, %c0_3, %c0_4] : memref<1x24x64xbf16, #tpu.memory_space<vmem>>, vector<1x24x64xbf16>
    %3 = vector.shape_cast %2 : vector<1x24x64xbf16> to vector<24x64xbf16>
    %c0_5 = arith.constant 0 : index
    %c0_6 = arith.constant 0 : index
    %c0_7 = arith.constant 0 : index
    %4 = vector.load %arg3[%c0_5, %c0_6, %c0_7] : memref<1x16x24xf32, #tpu.memory_space<vmem>>, vector<1x16x24xf32>
    %5 = vector.shape_cast %4 : vector<1x16x24xf32> to vector<16x24xf32>
    %6 = tpu.iota {dimensions = array<i32: 0>} : vector<8x24xi32>
    %7 = tpu.iota {dimensions = array<i32: 1>} : vector<8x24xi32>
    %8 = arith.cmpi sge, %7, %6 : vector<8x24xi32>
    %c16_i32 = arith.constant 16 : i32
    %9 = vector.broadcast %c16_i32 : i32 to vector<8x24xi32>
    %10 = arith.addi %6, %9 : vector<8x24xi32>
    %11 = arith.cmpi slt, %7, %10 : vector<8x24xi32>
    %12 = arith.andi %8, %11 : vector<8x24xi1>
    %13 = vector.extract_strided_slice %1 {offsets = [0, 0], sizes = [8, 16], strides = [1, 1]} : vector<8x32xbf16> to vector<8x16xbf16>
    %14 = vector.extract_strided_slice %3 {offsets = [0, 0], sizes = [24, 16], strides = [1, 1]} : vector<24x64xbf16> to vector<24x16xbf16>
    %15 = vector.extract_strided_slice %3 {offsets = [0, 32], sizes = [24, 16], strides = [1, 1]} : vector<24x64xbf16> to vector<24x16xbf16>
    %16 = tpu.transpose %14, [1, 0] : vector<24x16xbf16> -> vector<16x24xbf16>
    %cst = arith.constant dense<0.000000e+00> : vector<8x24xf32>
    %17 = tpu.matmul %13, %16, %cst {dimension_numbers = #tpu.dot_dimension_numbers<[1], [0], [0], [1], [0, 0, 1, 1], [], []>} : vector<8x16xbf16>, vector<16x24xbf16>, vector<8x24xf32> -> vector<8x24xf32>
    %18 = vector.extract_strided_slice %5 {offsets = [0, 0], sizes = [8, 24], strides = [1, 1]} : vector<16x24xf32> to vector<8x24xf32>
    %19 = arith.addf %17, %18 : vector<8x24xf32>
    %cst_8 = arith.constant 2.500000e-01 : f32
    %20 = vector.broadcast %cst_8 : f32 to vector<8x24xf32>
    %21 = arith.mulf %19, %20 : vector<8x24xf32>
    %cst_9 = arith.constant -1.000000e+30 : f32
    %22 = vector.broadcast %cst_9 : f32 to vector<8x24xf32>
    %23 = arith.select %12, %21, %22 : vector<8x24xi1>, vector<8x24xf32>
    %cst_10 = arith.constant dense<0xFF800000> : vector<8xf32>
    %24 = vector.multi_reduction <maximumf>, %23, %cst_10 [1] : vector<8x24xf32> to vector<8xf32>
    %25 = vector.shape_cast %24 : vector<8xf32> to vector<8x1xf32>
    %26 = vector.broadcast %25 : vector<8x1xf32> to vector<8x24xf32>
    %27 = arith.subf %23, %26 : vector<8x24xf32>
    %28 = math.exp %27 : vector<8x24xf32>
    %cst_11 = arith.constant dense<0.000000e+00> : vector<8xf32>
    %29 = vector.multi_reduction <add>, %28, %cst_11 [1] : vector<8x24xf32> to vector<8xf32>
    %30 = vector.shape_cast %29 : vector<8xf32> to vector<8x1xf32>
    %31 = tpu.reciprocal %30 {approx = true} : vector<8x1xf32> -> vector<8x1xf32>
    %32 = vector.broadcast %31 : vector<8x1xf32> to vector<8x24xf32>
    %33 = arith.mulf %28, %32 : vector<8x24xf32>
    %34 = arith.truncf %33 : vector<8x24xf32> to vector<8x24xbf16>
    %cst_12 = arith.constant dense<0.000000e+00> : vector<8x16xf32>
    %35 = tpu.matmul %34, %15, %cst_12 {dimension_numbers = #tpu.dot_dimension_numbers<[1], [0], [0], [1], [0, 0, 1, 1], [], []>} : vector<8x24xbf16>, vector<24x16xbf16>, vector<8x16xf32> -> vector<8x16xf32>
    %36 = arith.truncf %35 : vector<8x16xf32> to vector<8x16xbf16>
    %c0_13 = arith.constant 0 : index
    %c0_14 = arith.constant 0 : index
    %c0_15 = arith.constant 0 : index
    %37 = vector.load %arg4[%c0_13, %c0_14, %c0_15] : memref<1x8x32xbf16, #tpu.memory_space<vmem>>, vector<1x8x16xbf16>
    %38 = vector.shape_cast %37 : vector<1x8x16xbf16> to vector<8x16xbf16>
    %39 = vector.shape_cast %36 : vector<8x16xbf16> to vector<1x8x16xbf16>
    tpu.vector_store %arg4[%c0_13, %c0_14, %c0_15], %39 {strides = array<i32>} : memref<1x8x32xbf16, #tpu.memory_space<vmem>>, vector<1x8x16xbf16>,
    %40 = vector.extract_strided_slice %1 {offsets = [0, 16], sizes = [8, 16], strides = [1, 1]} : vector<8x32xbf16> to vector<8x16xbf16>
    %41 = vector.extract_strided_slice %3 {offsets = [0, 16], sizes = [24, 16], strides = [1, 1]} : vector<24x64xbf16> to vector<24x16xbf16>
    %42 = vector.extract_strided_slice %3 {offsets = [0, 48], sizes = [24, 16], strides = [1, 1]} : vector<24x64xbf16> to vector<24x16xbf16>
    %43 = tpu.transpose %41, [1, 0] : vector<24x16xbf16> -> vector<16x24xbf16>
    %cst_16 = arith.constant dense<0.000000e+00> : vector<8x24xf32>
    %44 = tpu.matmul %40, %43, %cst_16 {dimension_numbers = #tpu.dot_dimension_numbers<[1], [0], [0], [1], [0, 0, 1, 1], [], []>} : vector<8x16xbf16>, vector<16x24xbf16>, vector<8x24xf32> -> vector<8x24xf32>
    %45 = vector.extract_strided_slice %5 {offsets = [8, 0], sizes = [8, 24], strides = [1, 1]} : vector<16x24xf32> to vector<8x24xf32>
    %46 = arith.addf %44, %45 : vector<8x24xf32>
    %cst_17 = arith.constant 2.500000e-01 : f32
    %47 = vector.broadcast %cst_17 : f32 to vector<8x24xf32>
    %48 = arith.mulf %46, %47 : vector<8x24xf32>
    %cst_18 = arith.constant -1.000000e+30 : f32
    %49 = vector.broadcast %cst_18 : f32 to vector<8x24xf32>
    %50 = arith.select %12, %48, %49 : vector<8x24xi1>, vector<8x24xf32>
    %cst_19 = arith.constant dense<0xFF800000> : vector<8xf32>
    %51 = vector.multi_reduction <maximumf>, %50, %cst_19 [1] : vector<8x24xf32> to vector<8xf32>
    %52 = vector.shape_cast %51 : vector<8xf32> to vector<8x1xf32>
    %53 = vector.broadcast %52 : vector<8x1xf32> to vector<8x24xf32>
    %54 = arith.subf %50, %53 : vector<8x24xf32>
    %55 = math.exp %54 : vector<8x24xf32>
    %cst_20 = arith.constant dense<0.000000e+00> : vector<8xf32>
    %56 = vector.multi_reduction <add>, %55, %cst_20 [1] : vector<8x24xf32> to vector<8xf32>
    %57 = vector.shape_cast %56 : vector<8xf32> to vector<8x1xf32>
    %58 = tpu.reciprocal %57 {approx = true} : vector<8x1xf32> -> vector<8x1xf32>
    %59 = vector.broadcast %58 : vector<8x1xf32> to vector<8x24xf32>
    %60 = arith.mulf %55, %59 : vector<8x24xf32>
    %61 = arith.truncf %60 : vector<8x24xf32> to vector<8x24xbf16>
    %cst_21 = arith.constant dense<0.000000e+00> : vector<8x16xf32>
    %62 = tpu.matmul %61, %42, %cst_21 {dimension_numbers = #tpu.dot_dimension_numbers<[1], [0], [0], [1], [0, 0, 1, 1], [], []>} : vector<8x24xbf16>, vector<24x16xbf16>, vector<8x16xf32> -> vector<8x16xf32>
    %63 = arith.truncf %62 : vector<8x16xf32> to vector<8x16xbf16>
    %c0_22 = arith.constant 0 : index
    %c0_23 = arith.constant 0 : index
    %c16 = arith.constant 16 : index
    %64 = vector.load %arg4[%c0_22, %c0_23, %c16] : memref<1x8x32xbf16, #tpu.memory_space<vmem>>, vector<1x8x16xbf16>
    %65 = vector.shape_cast %64 : vector<1x8x16xbf16> to vector<8x16xbf16>
    %66 = vector.shape_cast %63 : vector<8x16xbf16> to vector<1x8x16xbf16>
    tpu.vector_store %arg4[%c0_22, %c0_23, %c16], %66 {strides = array<i32>} : memref<1x8x32xbf16, #tpu.memory_space<vmem>>, vector<1x8x16xbf16>,
    return
  }
  func.func @transform_0(%arg0: i32) -> (i32, i32, i32) {
    %c0_i32 = arith.constant 0 : i32
    %c0_i32_0 = arith.constant 0 : i32
    %c0_i32_1 = arith.constant 0 : i32
    return %arg0, %c0_i32, %c0_i32_0 : i32, i32, i32
  }
  func.func @transform_1(%arg0: i32) -> (i32, i32, i32) {
    %c0_i32 = arith.constant 0 : i32
    %c0_i32_0 = arith.constant 0 : i32
    %c0_i32_1 = arith.constant 0 : i32
    return %arg0, %c0_i32, %c0_i32_0 : i32, i32, i32
  }
  func.func @transform_2(%arg0: i32) -> (i32, i32, i32) {
    %c0_i32 = arith.constant 0 : i32
    %c0_i32_0 = arith.constant 0 : i32
    %c0_i32_1 = arith.constant 0 : i32
    return %arg0, %c0_i32, %c0_i32_0 : i32, i32, i32
  }
  func.func @transform_3(%arg0: i32) -> (i32, i32, i32) {
    %c0_i32 = arith.constant 0 : i32
    %c0_i32_0 = arith.constant 0 : i32
    %c0_i32_1 = arith.constant 0 : i32
    return %arg0, %c0_i32, %c0_i32_0 : i32, i32, i32
  }
}

module attributes {stable_mosaic.version = 11 : i64} {
  func.func @ffn_residual_ln_kernel(%arg0: i32, %arg1: memref<32x32xbf16, #tpu.memory_space<vmem>>, %arg2: memref<32x48xbf16, #tpu.memory_space<vmem>>, %arg3: memref<1x48xf32, #tpu.memory_space<vmem>>, %arg4: memref<48x32xbf16, #tpu.memory_space<vmem>>, %arg5: memref<1x32xf32, #tpu.memory_space<vmem>>, %arg6: memref<1x32xf32, #tpu.memory_space<vmem>>, %arg7: memref<1x32xf32, #tpu.memory_space<vmem>>, %arg8: memref<32x32xbf16, #tpu.memory_space<vmem>>) attributes {dimension_semantics = [#tpu.dimension_semantics<parallel>], iteration_bounds = array<i64: 1>, scalar_prefetch = 0 : i64, scratch_operands = 0 : i64, tpu.core_type = #tpu.core_type<tc>, window_params = [{transform_indices = @transform_0, window_bounds = array<i64: 32, 32>}, {pipeline_mode = #tpu.pipeline_mode<synchronous>, transform_indices = @transform_1, window_bounds = array<i64: 32, 48>}, {pipeline_mode = #tpu.pipeline_mode<synchronous>, transform_indices = @transform_2, window_bounds = array<i64: 1, 48>}, {pipeline_mode = #tpu.pipeline_mode<synchronous>, transform_indices = @transform_3, window_bounds = array<i64: 48, 32>}, {pipeline_mode = #tpu.pipeline_mode<synchronous>, transform_indices = @transform_4, window_bounds = array<i64: 1, 32>}, {pipeline_mode = #tpu.pipeline_mode<synchronous>, transform_indices = @transform_5, window_bounds = array<i64: 1, 32>}, {pipeline_mode = #tpu.pipeline_mode<synchronous>, transform_indices = @transform_6, window_bounds = array<i64: 1, 32>}, {transform_indices = @transform_7, window_bounds = array<i64: 32, 32>}]} {
    %c0 = arith.constant 0 : index
    %c0_0 = arith.constant 0 : index
    %0 = vector.load %arg1[%c0, %c0_0] : memref<32x32xbf16, #tpu.memory_space<vmem>>, vector<32x32xbf16>
    %c0_1 = arith.constant 0 : index
    %c0_2 = arith.constant 0 : index
    %1 = vector.load %arg2[%c0_1, %c0_2] : memref<32x48xbf16, #tpu.memory_space<vmem>>, vector<32x48xbf16>
    %cst = arith.constant dense<0.000000e+00> : vector<32x48xf32>
    %2 = tpu.matmul %0, %1, %cst {dimension_numbers = #tpu.dot_dimension_numbers<[1], [0], [0], [1], [0, 0, 1, 1], [], []>} : vector<32x32xbf16>, vector<32x48xbf16>, vector<32x48xf32> -> vector<32x48xf32>
    %c0_3 = arith.constant 0 : index
    %c0_4 = arith.constant 0 : index
    %3 = vector.load %arg3[%c0_3, %c0_4] : memref<1x48xf32, #tpu.memory_space<vmem>>, vector<1x48xf32>
    %4 = vector.broadcast %3 : vector<1x48xf32> to vector<32x48xf32>
    %5 = arith.addf %2, %4 : vector<32x48xf32>
    %cst_5 = arith.constant 0.000000e+00 : f32
    %6 = vector.broadcast %cst_5 : f32 to vector<32x48xf32>
    %7 = arith.maximumf %5, %6 : vector<32x48xf32>
    %8 = arith.truncf %7 : vector<32x48xf32> to vector<32x48xbf16>
    %c0_6 = arith.constant 0 : index
    %c0_7 = arith.constant 0 : index
    %9 = vector.load %arg4[%c0_6, %c0_7] : memref<48x32xbf16, #tpu.memory_space<vmem>>, vector<48x32xbf16>
    %cst_8 = arith.constant dense<0.000000e+00> : vector<32x32xf32>
    %10 = tpu.matmul %8, %9, %cst_8 {dimension_numbers = #tpu.dot_dimension_numbers<[1], [0], [0], [1], [0, 0, 1, 1], [], []>} : vector<32x48xbf16>, vector<48x32xbf16>, vector<32x32xf32> -> vector<32x32xf32>
    %c0_9 = arith.constant 0 : index
    %c0_10 = arith.constant 0 : index
    %11 = vector.load %arg5[%c0_9, %c0_10] : memref<1x32xf32, #tpu.memory_space<vmem>>, vector<1x32xf32>
    %12 = vector.broadcast %11 : vector<1x32xf32> to vector<32x32xf32>
    %13 = arith.addf %10, %12 : vector<32x32xf32>
    %14 = arith.extf %0 : vector<32x32xbf16> to vector<32x32xf32>
    %15 = arith.addf %13, %14 : vector<32x32xf32>
    %cst_11 = arith.constant dense<0.000000e+00> : vector<32xf32>
    %16 = vector.multi_reduction <add>, %15, %cst_11 [1] : vector<32x32xf32> to vector<32xf32>
    %17 = vector.shape_cast %16 : vector<32xf32> to vector<32x1xf32>
    %cst_12 = arith.constant 3.200000e+01 : f32
    %18 = vector.broadcast %cst_12 : f32 to vector<32x1xf32>
    %19 = arith.divf %17, %18 : vector<32x1xf32>
    %20 = vector.broadcast %19 : vector<32x1xf32> to vector<32x32xf32>
    %21 = arith.subf %15, %20 : vector<32x32xf32>
    %22 = arith.mulf %21, %21 : vector<32x32xf32>
    %cst_13 = arith.constant dense<0.000000e+00> : vector<32xf32>
    %23 = vector.multi_reduction <add>, %22, %cst_13 [1] : vector<32x32xf32> to vector<32xf32>
    %24 = vector.shape_cast %23 : vector<32xf32> to vector<32x1xf32>
    %cst_14 = arith.constant 3.200000e+01 : f32
    %25 = vector.broadcast %cst_14 : f32 to vector<32x1xf32>
    %26 = arith.divf %24, %25 : vector<32x1xf32>
    %27 = vector.broadcast %19 : vector<32x1xf32> to vector<32x32xf32>
    %28 = arith.subf %15, %27 : vector<32x32xf32>
    %cst_15 = arith.constant 9.99999974E-6 : f32
    %29 = vector.broadcast %cst_15 : f32 to vector<32x1xf32>
    %30 = arith.addf %26, %29 : vector<32x1xf32>
    %31 = math.rsqrt %30 : vector<32x1xf32>
    %32 = vector.broadcast %31 : vector<32x1xf32> to vector<32x32xf32>
    %33 = arith.mulf %28, %32 : vector<32x32xf32>
    %c0_16 = arith.constant 0 : index
    %c0_17 = arith.constant 0 : index
    %34 = vector.load %arg6[%c0_16, %c0_17] : memref<1x32xf32, #tpu.memory_space<vmem>>, vector<1x32xf32>
    %35 = vector.broadcast %34 : vector<1x32xf32> to vector<32x32xf32>
    %36 = arith.mulf %33, %35 : vector<32x32xf32>
    %c0_18 = arith.constant 0 : index
    %c0_19 = arith.constant 0 : index
    %37 = vector.load %arg7[%c0_18, %c0_19] : memref<1x32xf32, #tpu.memory_space<vmem>>, vector<1x32xf32>
    %38 = vector.broadcast %37 : vector<1x32xf32> to vector<32x32xf32>
    %39 = arith.addf %36, %38 : vector<32x32xf32>
    %40 = arith.truncf %39 : vector<32x32xf32> to vector<32x32xbf16>
    %c0_20 = arith.constant 0 : index
    %c0_21 = arith.constant 0 : index
    %41 = vector.load %arg8[%c0_20, %c0_21] : memref<32x32xbf16, #tpu.memory_space<vmem>>, vector<32x32xbf16>
    tpu.vector_store %arg8[%c0_20, %c0_21], %40 {strides = array<i32>} : memref<32x32xbf16, #tpu.memory_space<vmem>>, vector<32x32xbf16>,
    return
  }
  func.func @transform_0(%arg0: i32) -> (i32, i32) {
    %c0_i32 = arith.constant 0 : i32
    %c0_i32_0 = arith.constant 0 : i32
    return %arg0, %c0_i32 : i32, i32
  }
  func.func @transform_1(%arg0: i32) -> (i32, i32) {
    %c0_i32 = arith.constant 0 : i32
    %c0_i32_0 = arith.constant 0 : i32
    %c0_i32_1 = arith.constant 0 : i32
    return %c0_i32, %c0_i32_0 : i32, i32
  }
  func.func @transform_2(%arg0: i32) -> (i32, i32) {
    %c0_i32 = arith.constant 0 : i32
    %c0_i32_0 = arith.constant 0 : i32
    %c0_i32_1 = arith.constant 0 : i32
    return %c0_i32, %c0_i32_0 : i32, i32
  }
  func.func @transform_3(%arg0: i32) -> (i32, i32) {
    %c0_i32 = arith.constant 0 : i32
    %c0_i32_0 = arith.constant 0 : i32
    %c0_i32_1 = arith.constant 0 : i32
    return %c0_i32, %c0_i32_0 : i32, i32
  }
  func.func @transform_4(%arg0: i32) -> (i32, i32) {
    %c0_i32 = arith.constant 0 : i32
    %c0_i32_0 = arith.constant 0 : i32
    %c0_i32_1 = arith.constant 0 : i32
    return %c0_i32, %c0_i32_0 : i32, i32
  }
  func.func @transform_5(%arg0: i32) -> (i32, i32) {
    %c0_i32 = arith.constant 0 : i32
    %c0_i32_0 = arith.constant 0 : i32
    %c0_i32_1 = arith.constant 0 : i32
    return %c0_i32, %c0_i32_0 : i32, i32
  }
  func.func @transform_6(%arg0: i32) -> (i32, i32) {
    %c0_i32 = arith.constant 0 : i32
    %c0_i32_0 = arith.constant 0 : i32
    %c0_i32_1 = arith.constant 0 : i32
    return %c0_i32, %c0_i32_0 : i32, i32
  }
  func.func @transform_7(%arg0: i32) -> (i32, i32) {
    %c0_i32 = arith.constant 0 : i32
    %c0_i32_0 = arith.constant 0 : i32
    return %arg0, %c0_i32 : i32, i32
  }
}

module attributes {stable_mosaic.version = 11 : i64} {
  func.func @out_head_kernel(%arg0: i32, %arg1: memref<32x32xbf16, #tpu.memory_space<vmem>>, %arg2: memref<32x64xbf16, #tpu.memory_space<vmem>>, %arg3: memref<1x64xf32, #tpu.memory_space<vmem>>, %arg4: memref<32x64xf32, #tpu.memory_space<vmem>>) attributes {dimension_semantics = [#tpu.dimension_semantics<parallel>], iteration_bounds = array<i64: 1>, scalar_prefetch = 0 : i64, scratch_operands = 0 : i64, tpu.core_type = #tpu.core_type<tc>, window_params = [{transform_indices = @transform_0, window_bounds = array<i64: 32, 32>}, {pipeline_mode = #tpu.pipeline_mode<synchronous>, transform_indices = @transform_1, window_bounds = array<i64: 32, 64>}, {pipeline_mode = #tpu.pipeline_mode<synchronous>, transform_indices = @transform_2, window_bounds = array<i64: 1, 64>}, {transform_indices = @transform_3, window_bounds = array<i64: 32, 64>}]} {
    %c0 = arith.constant 0 : index
    %c0_0 = arith.constant 0 : index
    %0 = vector.load %arg1[%c0, %c0_0] : memref<32x32xbf16, #tpu.memory_space<vmem>>, vector<32x32xbf16>
    %c0_1 = arith.constant 0 : index
    %c0_2 = arith.constant 0 : index
    %1 = vector.load %arg2[%c0_1, %c0_2] : memref<32x64xbf16, #tpu.memory_space<vmem>>, vector<32x64xbf16>
    %cst = arith.constant dense<0.000000e+00> : vector<32x64xf32>
    %2 = tpu.matmul %0, %1, %cst {dimension_numbers = #tpu.dot_dimension_numbers<[1], [0], [0], [1], [0, 0, 1, 1], [], []>} : vector<32x32xbf16>, vector<32x64xbf16>, vector<32x64xf32> -> vector<32x64xf32>
    %c0_3 = arith.constant 0 : index
    %c0_4 = arith.constant 0 : index
    %3 = vector.load %arg3[%c0_3, %c0_4] : memref<1x64xf32, #tpu.memory_space<vmem>>, vector<1x64xf32>
    %4 = vector.broadcast %3 : vector<1x64xf32> to vector<32x64xf32>
    %5 = arith.addf %2, %4 : vector<32x64xf32>
    %cst_5 = arith.constant dense<0xFF800000> : vector<32xf32>
    %6 = vector.multi_reduction <maximumf>, %5, %cst_5 [1] : vector<32x64xf32> to vector<32xf32>
    %7 = vector.shape_cast %6 : vector<32xf32> to vector<32x1xf32>
    %8 = vector.broadcast %7 : vector<32x1xf32> to vector<32x64xf32>
    %9 = arith.subf %5, %8 : vector<32x64xf32>
    %10 = math.exp %9 : vector<32x64xf32>
    %cst_6 = arith.constant dense<0.000000e+00> : vector<32xf32>
    %11 = vector.multi_reduction <add>, %10, %cst_6 [1] : vector<32x64xf32> to vector<32xf32>
    %12 = vector.shape_cast %11 : vector<32xf32> to vector<32x1xf32>
    %13 = math.log %12 : vector<32x1xf32>
    %14 = vector.broadcast %13 : vector<32x1xf32> to vector<32x64xf32>
    %15 = arith.subf %9, %14 : vector<32x64xf32>
    %c0_7 = arith.constant 0 : index
    %c0_8 = arith.constant 0 : index
    %16 = vector.load %arg4[%c0_7, %c0_8] : memref<32x64xf32, #tpu.memory_space<vmem>>, vector<32x64xf32>
    tpu.vector_store %arg4[%c0_7, %c0_8], %15 {strides = array<i32>} : memref<32x64xf32, #tpu.memory_space<vmem>>, vector<32x64xf32>,
    return
  }
  func.func @transform_0(%arg0: i32) -> (i32, i32) {
    %c0_i32 = arith.constant 0 : i32
    %c0_i32_0 = arith.constant 0 : i32
    return %arg0, %c0_i32 : i32, i32
  }
  func.func @transform_1(%arg0: i32) -> (i32, i32) {
    %c0_i32 = arith.constant 0 : i32
    %c0_i32_0 = arith.constant 0 : i32
    %c0_i32_1 = arith.constant 0 : i32
    return %c0_i32, %c0_i32_0 : i32, i32
  }
  func.func @transform_2(%arg0: i32) -> (i32, i32) {
    %c0_i32 = arith.constant 0 : i32
    %c0_i32_0 = arith.constant 0 : i32
    %c0_i32_1 = arith.constant 0 : i32
    return %c0_i32, %c0_i32_0 : i32, i32
  }
  func.func @transform_3(%arg0: i32) -> (i32, i32) {
    %c0_i32 = arith.constant 0 : i32
    %c0_i32_0 = arith.constant 0 : i32
    return %arg0, %c0_i32 : i32, i32
  }
}

module attributes {stable_mosaic.version = 11 : i64} {
  func.func @matmul_residual_ln_kernel(%arg0: i32, %arg1: memref<32x32xbf16, #tpu.memory_space<vmem>>, %arg2: memref<32x32xbf16, #tpu.memory_space<vmem>>, %arg3: memref<32x32xbf16, #tpu.memory_space<vmem>>, %arg4: memref<1x32xf32, #tpu.memory_space<vmem>>, %arg5: memref<1x32xf32, #tpu.memory_space<vmem>>, %arg6: memref<32x32xbf16, #tpu.memory_space<vmem>>) attributes {dimension_semantics = [#tpu.dimension_semantics<parallel>], iteration_bounds = array<i64: 1>, scalar_prefetch = 0 : i64, scratch_operands = 0 : i64, tpu.core_type = #tpu.core_type<tc>, window_params = [{transform_indices = @transform_0, window_bounds = array<i64: 32, 32>}, {pipeline_mode = #tpu.pipeline_mode<synchronous>, transform_indices = @transform_1, window_bounds = array<i64: 32, 32>}, {transform_indices = @transform_2, window_bounds = array<i64: 32, 32>}, {pipeline_mode = #tpu.pipeline_mode<synchronous>, transform_indices = @transform_3, window_bounds = array<i64: 1, 32>}, {pipeline_mode = #tpu.pipeline_mode<synchronous>, transform_indices = @transform_4, window_bounds = array<i64: 1, 32>}, {transform_indices = @transform_5, window_bounds = array<i64: 32, 32>}]} {
    %c0 = arith.constant 0 : index
    %c0_0 = arith.constant 0 : index
    %0 = vector.load %arg1[%c0, %c0_0] : memref<32x32xbf16, #tpu.memory_space<vmem>>, vector<32x32xbf16>
    %c0_1 = arith.constant 0 : index
    %c0_2 = arith.constant 0 : index
    %1 = vector.load %arg2[%c0_1, %c0_2] : memref<32x32xbf16, #tpu.memory_space<vmem>>, vector<32x32xbf16>
    %cst = arith.constant dense<0.000000e+00> : vector<32x32xf32>
    %2 = tpu.matmul %0, %1, %cst {dimension_numbers = #tpu.dot_dimension_numbers<[1], [0], [0], [1], [0, 0, 1, 1], [], []>} : vector<32x32xbf16>, vector<32x32xbf16>, vector<32x32xf32> -> vector<32x32xf32>
    %c0_3 = arith.constant 0 : index
    %c0_4 = arith.constant 0 : index
    %3 = vector.load %arg3[%c0_3, %c0_4] : memref<32x32xbf16, #tpu.memory_space<vmem>>, vector<32x32xbf16>
    %4 = arith.extf %3 : vector<32x32xbf16> to vector<32x32xf32>
    %5 = arith.addf %2, %4 : vector<32x32xf32>
    %cst_5 = arith.constant dense<0.000000e+00> : vector<32xf32>
    %6 = vector.multi_reduction <add>, %5, %cst_5 [1] : vector<32x32xf32> to vector<32xf32>
    %7 = vector.shape_cast %6 : vector<32xf32> to vector<32x1xf32>
    %cst_6 = arith.constant 3.200000e+01 : f32
    %8 = vector.broadcast %cst_6 : f32 to vector<32x1xf32>
    %9 = arith.divf %7, %8 : vector<32x1xf32>
    %10 = vector.broadcast %9 : vector<32x1xf32> to vector<32x32xf32>
    %11 = arith.subf %5, %10 : vector<32x32xf32>
    %12 = arith.mulf %11, %11 : vector<32x32xf32>
    %cst_7 = arith.constant dense<0.000000e+00> : vector<32xf32>
    %13 = vector.multi_reduction <add>, %12, %cst_7 [1] : vector<32x32xf32> to vector<32xf32>
    %14 = vector.shape_cast %13 : vector<32xf32> to vector<32x1xf32>
    %cst_8 = arith.constant 3.200000e+01 : f32
    %15 = vector.broadcast %cst_8 : f32 to vector<32x1xf32>
    %16 = arith.divf %14, %15 : vector<32x1xf32>
    %17 = vector.broadcast %9 : vector<32x1xf32> to vector<32x32xf32>
    %18 = arith.subf %5, %17 : vector<32x32xf32>
    %cst_9 = arith.constant 9.99999974E-6 : f32
    %19 = vector.broadcast %cst_9 : f32 to vector<32x1xf32>
    %20 = arith.addf %16, %19 : vector<32x1xf32>
    %21 = math.rsqrt %20 : vector<32x1xf32>
    %22 = vector.broadcast %21 : vector<32x1xf32> to vector<32x32xf32>
    %23 = arith.mulf %18, %22 : vector<32x32xf32>
    %c0_10 = arith.constant 0 : index
    %c0_11 = arith.constant 0 : index
    %24 = vector.load %arg4[%c0_10, %c0_11] : memref<1x32xf32, #tpu.memory_space<vmem>>, vector<1x32xf32>
    %25 = vector.broadcast %24 : vector<1x32xf32> to vector<32x32xf32>
    %26 = arith.mulf %23, %25 : vector<32x32xf32>
    %c0_12 = arith.constant 0 : index
    %c0_13 = arith.constant 0 : index
    %27 = vector.load %arg5[%c0_12, %c0_13] : memref<1x32xf32, #tpu.memory_space<vmem>>, vector<1x32xf32>
    %28 = vector.broadcast %27 : vector<1x32xf32> to vector<32x32xf32>
    %29 = arith.addf %26, %28 : vector<32x32xf32>
    %30 = arith.truncf %29 : vector<32x32xf32> to vector<32x32xbf16>
    %c0_14 = arith.constant 0 : index
    %c0_15 = arith.constant 0 : index
    %31 = vector.load %arg6[%c0_14, %c0_15] : memref<32x32xbf16, #tpu.memory_space<vmem>>, vector<32x32xbf16>
    tpu.vector_store %arg6[%c0_14, %c0_15], %30 {strides = array<i32>} : memref<32x32xbf16, #tpu.memory_space<vmem>>, vector<32x32xbf16>,
    return
  }
  func.func @transform_0(%arg0: i32) -> (i32, i32) {
    %c0_i32 = arith.constant 0 : i32
    %c0_i32_0 = arith.constant 0 : i32
    return %arg0, %c0_i32 : i32, i32
  }
  func.func @transform_1(%arg0: i32) -> (i32, i32) {
    %c0_i32 = arith.constant 0 : i32
    %c0_i32_0 = arith.constant 0 : i32
    %c0_i32_1 = arith.constant 0 : i32
    return %c0_i32, %c0_i32_0 : i32, i32
  }
  func.func @transform_2(%arg0: i32) -> (i32, i32) {
    %c0_i32 = arith.constant 0 : i32
    %c0_i32_0 = arith.constant 0 : i32
    return %arg0, %c0_i32 : i32, i32
  }
  func.func @transform_3(%arg0: i32) -> (i32, i32) {
    %c0_i32 = arith.constant 0 : i32
    %c0_i32_0 = arith.constant 0 : i32
    %c0_i32_1 = arith.constant 0 : i32
    return %c0_i32, %c0_i32_0 : i32, i32
  }
  func.func @transform_4(%arg0: i32) -> (i32, i32) {
    %c0_i32 = arith.constant 0 : i32
    %c0_i32_0 = arith.constant 0 : i32
    %c0_i32_1 = arith.constant 0 : i32
    return %c0_i32, %c0_i32_0 : i32, i32
  }
  func.func @transform_5(%arg0: i32) -> (i32, i32) {
    %c0_i32 = arith.constant 0 : i32
    %c0_i32_0 = arith.constant 0 : i32
    return %arg0, %c0_i32 : i32, i32
  }
}

</mosaic_0001>

<llo_original>
// kernel: transformer_seq_forward.15
$region0: #{transformer_seq_forward.15}
  #allocation0 [shape = 'u32[]', space=smem, size = 0x4, offset = 0x4, fixed_abs, tag = 'smem constant byte address 0x4 - core index']
  #allocation1 [shape = 'u32[72,128]{1,0:T(1,128)}', space=vmem, size = 0x9000, scoped, tag = 'internal scratch']
  %s0 = inlined_call_operand.vmem [shape: bf16[2,8,32], index: 0, kind: input, shape index: {}]
  %s1 = inlined_call_operand.vmem [shape: bf16[16,16], index: 1, kind: input, shape index: {}]
  %s2 = inlined_call_operand.vmem [shape: f32[2,16,16], index: 2, kind: output, shape index: {}]
  %s3 = sld [smem:[#allocation0]]
  $region41: #{transformer_seq_forward.15} parent=0
    _
  %s5 = ssub.s32 1, %s3
  %s6 = scalar_select 0, %s5, %s3
  loop: start=0, step=1, limit=4
  $region2: #{transformer_seq_forward.15} parent=0 // loop_pre_header
    _
  $region3: #{transformer_seq_forward.15} parent=0 // loop_header
    %s8 = sphi 0, %s12
    %p9 = scmp.ge.s32.totalorder %s8, 4
    %s18 = sphi 0, %s20
    %s21 = sphi 0, %s18
    %s22 = sphi 0, %s21
    %s38 = sphi 0, %s22
    %s42 = sphi 0, %s42
    %s44 = sphi 0, %s42
    %s45 = sphi 0, %s44
    %s59 = sphi 0, %s45
    %s65 = sphi 0, %s67
    %s68 = sphi 0, %s65
    %s69 = sphi 0, %s68
    %s85 = sphi 0, %s69
  $region4: #{transformer_seq_forward.15} parent=0 // loop_header_branch
    %11 = sbr.rel (%p9) target = $region8
  $region5: #{transformer_seq_forward.15} parent=0 // loop_body
    %s13 = ssub.s32 %s8, 1
    %s14 = ssub.s32 %s8, 2
    %s15 = sadd.s32 %s8, 1
    %s16 = ssub.s32 %s8, %s15
    %p17 = scmp.eq.s32.totalorder %s16, 0
    %s19 = sadd.s32 %s18, 1
    %s20 = scalar_select %p17, %s18, %s19
    %p23 = pneg %p17
    %p24 = scmp.eq.s32.totalorder %s8, 1
    %p25 = por %p23, %p24
    %p26 = scmp.ne.s32.totalorder %s18, %s21
    %p27 = scmp.eq.s32.totalorder %s8, 0
    %p28 = por %p26, %p27
    %p29 = scmp.ne.s32.totalorder %s18, %s21
    %p30 = scmp.eq.s32.totalorder %s13, 1
    %p31 = por %p29, %p30
    %p32 = scmp.ne.s32.totalorder %s21, %s22
    %p33 = scmp.eq.s32.totalorder %s13, 0
    %p34 = por %p32, %p33
    %p35 = scmp.ne.s32.totalorder %s21, %s22
    %p36 = scmp.eq.s32.totalorder %s14, 1
    %p37 = por %p35, %p36
    %p39 = scmp.ne.s32.totalorder %s22, %s38
    %p40 = scmp.eq.s32.totalorder %s14, 0
    %p41 = por %p39, %p40
    %s43 = sadd.s32 %s42, 1
    %p46 = scmp.eq.s32.totalorder %s8, 1
    %p47 = scmp.ne.s32.totalorder %s42, %s44
    %p48 = scmp.eq.s32.totalorder %s8, 0
    %p49 = por %p47, %p48
    %p50 = scmp.ne.s32.totalorder %s42, %s44
    %p51 = scmp.eq.s32.totalorder %s13, 1
    %p52 = por %p50, %p51
    %p53 = scmp.ne.s32.totalorder %s44, %s45
    %p54 = scmp.eq.s32.totalorder %s13, 0
    %p55 = por %p53, %p54
    %p56 = scmp.ne.s32.totalorder %s44, %s45
    %p57 = scmp.eq.s32.totalorder %s14, 1
    %p58 = por %p56, %p57
    %p60 = scmp.ne.s32.totalorder %s45, %s59
    %p61 = scmp.eq.s32.totalorder %s14, 0
    %p62 = por %p60, %p61
    %s63 = ssub.s32 %s8, %s15
    %p64 = scmp.eq.s32.totalorder %s63, 0
    %s66 = sadd.s32 %s65, 1
    %s67 = scalar_select %p64, %s65, %s66
    %p70 = pneg %p64
    %p71 = scmp.eq.s32.totalorder %s8, 1
    %p72 = por %p70, %p71
    %p73 = scmp.ne.s32.totalorder %s65, %s68
    %p74 = scmp.eq.s32.totalorder %s8, 0
    %p75 = por %p73, %p74
    %p76 = scmp.ne.s32.totalorder %s65, %s68
    %p77 = scmp.eq.s32.totalorder %s13, 1
    %p78 = por %p76, %p77
    %p79 = scmp.ne.s32.totalorder %s68, %s69
    %p80 = scmp.eq.s32.totalorder %s13, 0
    %p81 = por %p79, %p80
    %p82 = scmp.ne.s32.totalorder %s68, %s69
    %p83 = scmp.eq.s32.totalorder %s14, 1
    %p84 = por %p82, %p83
    %p86 = scmp.ne.s32.totalorder %s69, %s85
    %p87 = scmp.eq.s32.totalorder %s14, 0
    %p88 = por %p86, %p87
    %p89 = scmp.le.s32.totalorder 1, %s8
    %p90 = scmp.lt.s32.totalorder %s8, 3
    %p91 = pnand %p89, %p90
    %p92 = pneg %p91
    // Predicated region
    $region9: #{transformer_seq_forward.15} parent=5 // pred_check
      _
    $region10: #{transformer_seq_forward.15} parent=5 // pred_check_branch
      %94 = sbr.rel (%p91) target = $region12
    $region11: #{transformer_seq_forward.15} parent=5 // pred_region
      %s95 = ssub.s32 %s8, 1
      // Predicated region
      $region13: #{transformer_seq_forward.15} parent=11 // pred_check
        %p96 = pneg %p55
      $region14: #{transformer_seq_forward.15} parent=11 // pred_check_branch
        %98 = sbr.rel (%p96) target = $region16
      $region15: #{transformer_seq_forward.15} parent=11 // pred_region
        _
      $region16: #{transformer_seq_forward.15} parent=11 // pred_fallthru
        _
    $region12: #{transformer_seq_forward.15} parent=5 // pred_fallthru
      _
    %p99 = scmp.lt.s32.totalorder %s8, 2
    // Predicated region
    $region17: #{transformer_seq_forward.15} parent=5 // pred_check
      %p100 = pneg %p99
    $region18: #{transformer_seq_forward.15} parent=5 // pred_check_branch
      %102 = sbr.rel (%p100) target = $region20
    $region19: #{transformer_seq_forward.15} parent=5 // pred_region
      // Predicated region
      $region21: #{transformer_seq_forward.15} parent=19 // pred_check
        %p103 = pneg %p28
      $region22: #{transformer_seq_forward.15} parent=19 // pred_check_branch
        %105 = sbr.rel (%p103) target = $region24
      $region23: #{transformer_seq_forward.15} parent=19 // pred_region
        %p106 = scmp.lt.s32.totalorder %s8, 1
        %s107 = scalar_select %p106, %s8, 1
        %s108 = smul.addr %s107, 4
        %s109 = scalar_lea.vmem %s0, %s108
      $region24: #{transformer_seq_forward.15} parent=19 // pred_fallthru
        _
    $region20: #{transformer_seq_forward.15} parent=5 // pred_fallthru
      _
    %p110 = scmp.le.s32.totalorder 1, %s8
    %p111 = scmp.lt.s32.totalorder %s8, 3
    %p112 = pnand %p110, %p111
    %p113 = pneg %p112
    // Predicated region
    $region25: #{transformer_seq_forward.15} parent=5 // pred_check
      _
    $region26: #{transformer_seq_forward.15} parent=5 // pred_check_branch
      %115 = sbr.rel (%p112) target = $region28
    $region27: #{transformer_seq_forward.15} parent=5 // pred_region
      %s116 = ssub.s32 %s8, 1
      %p117 = scmp.lt.s32.totalorder %s13, 1
      %s118 = scalar_select %p117, %s13, 1
      %s119 = smul.addr %s118, 4
      %s120 = scalar_lea.vmem %s0, %s119
      %p121 = pneg %p34
      %p122 = pneg %p31
      %p123 = pneg %p55
      %p124 = pneg %p52
      %p125 = pneg %p81
      %p126 = pneg %p78
      %p127 = scmp.lt.s32.totalorder %s13, 1
      %s128 = scalar_select %p127, %s13, 1
      %s129 = smul.addr %s128, 2
      %s130 = smul.addr %s129, 8
      %s131 = scalar_lea.vmem %s2, %s130
      %p132 = scmp.lt.s32.totalorder %s13, 1
      %s133 = scalar_select %p132, %s13, 1
      %s134 = smul.addr %s133, 4
      %s135 = scalar_lea.vmem %s0, %s134
      %p136 = scmp.lt.s32.totalorder %s13, 1
      %s137 = scalar_select %p136, %s13, 1
      %s138 = smul.addr %s137, 2
      %s139 = smul.addr %s138, 8
      %s140 = scalar_lea.vmem %s2, %s139
      %v142 = vld [vmem:[%s135] sm:$0xf]
      %v143 = vld [vmem:[%s1] sm:$0xf]
      %v144 = vld [vmem:[%s1 + $0x4] sm:$0xf]
      %v147 = vunpack.c.l.b16 %v143
      %v148 = vunpack.c.l.b16 %v144
      %v149 = vpack.c.b16 %v148, %v147
      %vm151 = vcmask 130048
      %v153 = vsel %vm151, %v142, 0
      %155 = vmatpush.bf16.msra.mxu0 0
      %156 = vmatpush.bf16.msra.mxu0 0
      %157 = vmatpush.bf16.msra.mxu0 0
      %158 = vmatpush.bf16.msra.mxu0 0
      %159 = vmatpush.bf16.msra.mxu0 0
      %160 = vmatpush.bf16.msra.mxu0 0
      %161 = vmatpush.bf16.msra.mxu0 0
      %162 = vmatpush.bf16.msra.mxu0 %v149
      %163 = vmatmul.bf16.gmra.mxu0 %v153
      %v164 = vpop.f32.mrf.mxu0
      %v165 = vadd.f32 0.0, %v164
      %v166 = vpop.f32.mrf.mxu0
      %167 = vdwg.mxu0
      %168 = vst.msk [vmem:[%s140] sm:$0xff] %vm151, %v165
      %v170 = vunpack.c.l.b16 %v142
      %v171 = vpack.c.b16 %v170, %v170
      %172 = vrot.lane.b32.xlu0 %v171, 112
      %v173 = vpop.permute.xlu0 %172
      %v175 = vsel %vm151, %v173, 0
      %177 = vmatpush.bf16.msra.mxu0 0
      %178 = vmatpush.bf16.msra.mxu0 0
      %179 = vmatpush.bf16.msra.mxu0 0
      %180 = vmatpush.bf16.msra.mxu0 0
      %181 = vmatpush.bf16.msra.mxu0 0
      %182 = vmatpush.bf16.msra.mxu0 0
      %183 = vmatpush.bf16.msra.mxu0 0
      %184 = vmatpush.bf16.msra.mxu0 %v149
      %185 = vmatmul.bf16.gmra.mxu0 %v175
      %v186 = vpop.f32.mrf.mxu0
      %v187 = vadd.f32 0.0, %v186
      %v188 = vpop.f32.mrf.mxu0
      %189 = vdwg.mxu0
      %190 = vst.msk [vmem:[%s140 + $0x8] sm:$0xff] %vm151, %v187
      %p191 = scmp.lt.s32.totalorder %s13, 1
      %s192 = scalar_select %p191, %s13, 1
      %s193 = smul.addr %s192, 2
      %s194 = smul.addr %s193, 8
      %s195 = scalar_lea.vmem %s2, %s194
      // Predicated region
      $region29: #{transformer_seq_forward.15} parent=27 // pred_check
        %p196 = pneg %p78
      $region30: #{transformer_seq_forward.15} parent=27 // pred_check_branch
        %198 = sbr.rel (%p196) target = $region32
      $region31: #{transformer_seq_forward.15} parent=27 // pred_region
        _
      $region32: #{transformer_seq_forward.15} parent=27 // pred_fallthru
        _
    $region28: #{transformer_seq_forward.15} parent=5 // pred_fallthru
      _
    %p199 = scmp.le.s32.totalorder 2, %s8
    // Predicated region
    $region33: #{transformer_seq_forward.15} parent=5 // pred_check
      %p200 = pneg %p199
    $region34: #{transformer_seq_forward.15} parent=5 // pred_check_branch
      %202 = sbr.rel (%p200) target = $region36
    $region35: #{transformer_seq_forward.15} parent=5 // pred_region
      %s203 = ssub.s32 %s8, 2
      // Predicated region
      $region37: #{transformer_seq_forward.15} parent=35 // pred_check
        %p204 = pneg %p84
      $region38: #{transformer_seq_forward.15} parent=35 // pred_check_branch
        %206 = sbr.rel (%p204) target = $region40
      $region39: #{transformer_seq_forward.15} parent=35 // pred_region
        %p207 = scmp.lt.s32.totalorder %s14, 1
        %s208 = scalar_select %p207, %s14, 1
        %s209 = smul.addr %s208, 2
        %s210 = smul.addr %s209, 8
        %s211 = scalar_lea.vmem %s2, %s210
      $region40: #{transformer_seq_forward.15} parent=35 // pred_fallthru
        _
    $region36: #{transformer_seq_forward.15} parent=5 // pred_fallthru
      _
  $region6: #{transformer_seq_forward.15} parent=0 // loop_footer
    %s12 = sadd.s32 1, %s8
  $region7: #{transformer_seq_forward.15} parent=0 // loop_footer_branch
    %7 = sbr.rel target = $region3
  $region8: #{transformer_seq_forward.15} parent=0 // loop_exit
    _

// kernel: transformer_seq_forward.14
$region0: #{transformer_seq_forward.14}
  #allocation0 [shape = 'u32[]', space=smem, size = 0x4, offset = 0x4, fixed_abs, tag = 'smem constant byte address 0x4 - core index']
  #allocation1 [shape = 'u32[72,128]{1,0:T(1,128)}', space=vmem, size = 0x9000, scoped, tag = 'internal scratch']
  %s0 = inlined_call_operand.vmem [shape: bf16[64,32], index: 0, kind: input, shape index: {}]
  %s1 = inlined_call_operand.vmem [shape: bf16[32,64], index: 1, kind: input, shape index: {}]
  %s2 = inlined_call_operand.vmem [shape: bf16[64,64], index: 2, kind: output, shape index: {}]
  %s3 = sld [smem:[#allocation0]]
  $region18: #{transformer_seq_forward.14} parent=0
    _
  %s5 = ssub.s32 1, %s3
  %s6 = scalar_select 0, %s5, %s3
  // Predicated region
  $region2: #{transformer_seq_forward.14} parent=0 // pred_check
    _
  $region3: #{transformer_seq_forward.14} parent=0 // pred_check_branch
    %8 = sbr.rel (0) target = $region5
  $region4: #{transformer_seq_forward.14} parent=0 // pred_region
    _
  $region5: #{transformer_seq_forward.14} parent=0 // pred_fallthru
    _
  // Predicated region
  $region6: #{transformer_seq_forward.14} parent=0 // pred_check
    _
  $region7: #{transformer_seq_forward.14} parent=0 // pred_check_branch
    %10 = sbr.rel (0) target = $region9
  $region8: #{transformer_seq_forward.14} parent=0 // pred_region
    _
  $region9: #{transformer_seq_forward.14} parent=0 // pred_fallthru
    _
  %v12 = vld [vmem:[%s0] sm:$0xf]
  %v13 = vld [vmem:[%s0 + $0x4] sm:$0xf]
  %v14 = vld [vmem:[%s0 + $0x8] sm:$0xf]
  %v15 = vld [vmem:[%s0 + $0xc] sm:$0xf]
  %v16 = vld [vmem:[%s0 + $0x10] sm:$0xf]
  %v17 = vld [vmem:[%s0 + $0x14] sm:$0xf]
  %v18 = vld [vmem:[%s0 + $0x18] sm:$0xf]
  %v19 = vld [vmem:[%s0 + $0x1c] sm:$0xf]
  %v20 = vld [vmem:[%s1] sm:$0xf]
  %v21 = vld [vmem:[%s1 + $0x4] sm:$0xf]
  %v22 = vld [vmem:[%s1 + $0x8] sm:$0xf]
  %v23 = vld [vmem:[%s1 + $0xc] sm:$0xf]
  %v32 = vunpack.c.l.b16 %v12
  %v33 = vunpack.c.l.b16 %v13
  %v34 = vunpack.c.l.b16 %v14
  %v35 = vunpack.c.l.b16 %v15
  %v36 = vunpack.c.l.b16 %v16
  %v37 = vunpack.c.l.b16 %v17
  %v38 = vunpack.c.l.b16 %v18
  %v39 = vunpack.c.l.b16 %v19
  %v40 = vpack.c.b16 %v33, %v32
  %v41 = vpack.c.b16 %v35, %v34
  %v42 = vpack.c.b16 %v37, %v36
  %v43 = vpack.c.b16 %v39, %v38
  %v48 = vunpack.c.l.b16 %v20
  %v49 = vunpack.c.l.b16 %v21
  %v50 = vunpack.c.l.b16 %v22
  %v51 = vunpack.c.l.b16 %v23
  %v52 = vpack.c.b16 %v49, %v48
  %v53 = vpack.c.b16 %v51, %v50
  %vm56 = vcmask 261120
  %v58 = vsel %vm56, %v40, 0
  %v61 = vsel %vm56, %v41, 0
  %v64 = vsel %vm56, %v42, 0
  %v67 = vsel %vm56, %v43, 0
  %69 = vmatpush.bf16.msra.mxu0 0
  %70 = vmatpush.bf16.msra.mxu0 0
  %71 = vmatpush.bf16.msra.mxu0 0
  %72 = vmatpush.bf16.msra.mxu0 0
  %73 = vmatpush.bf16.msra.mxu0 0
  %74 = vmatpush.bf16.msra.mxu0 0
  %75 = vmatpush.bf16.msra.mxu0 %v53
  %76 = vmatpush.bf16.msra.mxu0 %v52
  %77 = vmatmul.bf16.gmra.mxu0 %v58
  %v78 = vpop.f32.mrf.mxu0
  %v79 = vadd.f32 0.0, %v78
  %v80 = vpop.f32.mrf.mxu0
  %v81 = vadd.f32 0.0, %v80
  %82 = vmatmul.bf16.gmra.mxu0 %v61
  %v83 = vpop.f32.mrf.mxu0
  %v84 = vadd.f32 0.0, %v83
  %v85 = vpop.f32.mrf.mxu0
  %v86 = vadd.f32 0.0, %v85
  %87 = vmatmul.bf16.gmra.mxu0 %v64
  %v88 = vpop.f32.mrf.mxu0
  %v89 = vadd.f32 0.0, %v88
  %v90 = vpop.f32.mrf.mxu0
  %v91 = vadd.f32 0.0, %v90
  %92 = vmatmul.bf16.gmra.mxu0 %v67
  %v93 = vpop.f32.mrf.mxu0
  %v94 = vadd.f32 0.0, %v93
  %v95 = vpop.f32.mrf.mxu0
  %v96 = vadd.f32 0.0, %v95
  %97 = vdwg.mxu0
  %v98 = vpack.c.bf16 %v79, %v79
  %v99 = vpack.c.bf16 %v81, %v81
  %v100 = vpack.c.bf16 %v84, %v84
  %v101 = vpack.c.bf16 %v86, %v86
  %v102 = vpack.c.bf16 %v89, %v89
  %v103 = vpack.c.bf16 %v91, %v91
  %v104 = vpack.c.bf16 %v94, %v94
  %v105 = vpack.c.bf16 %v96, %v96
  %vm106 = vcmask 519168
  %107 = vst.msk [vmem:[%s2] sm:$0xf] %vm106, %v98
  %108 = vst.msk [vmem:[%s2 + $0x4] sm:$0xf] %vm106, %v99
  %109 = vst.msk [vmem:[%s2 + $0x8] sm:$0xf] %vm106, %v100
  %110 = vst.msk [vmem:[%s2 + $0xc] sm:$0xf] %vm106, %v101
  %111 = vst.msk [vmem:[%s2 + $0x10] sm:$0xf] %vm106, %v102
  %112 = vst.msk [vmem:[%s2 + $0x14] sm:$0xf] %vm106, %v103
  %113 = vst.msk [vmem:[%s2 + $0x18] sm:$0xf] %vm106, %v104
  %114 = vst.msk [vmem:[%s2 + $0x1c] sm:$0xf] %vm106, %v105
  // Predicated region
  $region10: #{transformer_seq_forward.14} parent=0 // pred_check
    _
  $region11: #{transformer_seq_forward.14} parent=0 // pred_check_branch
    %116 = sbr.rel (0) target = $region13
  $region12: #{transformer_seq_forward.14} parent=0 // pred_region
    _
  $region13: #{transformer_seq_forward.14} parent=0 // pred_fallthru
    _
  // Predicated region
  $region14: #{transformer_seq_forward.14} parent=0 // pred_check
    _
  $region15: #{transformer_seq_forward.14} parent=0 // pred_check_branch
    %118 = sbr.rel (0) target = $region17
  $region16: #{transformer_seq_forward.14} parent=0 // pred_region
    _
  $region17: #{transformer_seq_forward.14} parent=0 // pred_fallthru
    _

// kernel: transformer_seq_forward.13
$region0: #{transformer_seq_forward.13}
  #allocation0 [shape = 'u32[]', space=smem, size = 0x4, offset = 0x4, fixed_abs, tag = 'smem constant byte address 0x4 - core index']
  #allocation1 [shape = 'u32[72,128]{1,0:T(1,128)}', space=vmem, size = 0x9000, scoped, tag = 'internal scratch']
  %s0 = inlined_call_operand.vmem [shape: bf16[32,32], index: 0, kind: input, shape index: {}]
  %s1 = inlined_call_operand.vmem [shape: bf16[32,32], index: 1, kind: input, shape index: {}]
  %s2 = inlined_call_operand.vmem [shape: bf16[32,32], index: 2, kind: output, shape index: {}]
  %s3 = sld [smem:[#allocation0]]
  $region18: #{transformer_seq_forward.13} parent=0
    _
  %s5 = ssub.s32 1, %s3
  %s6 = scalar_select 0, %s5, %s3
  // Predicated region
  $region2: #{transformer_seq_forward.13} parent=0 // pred_check
    _
  $region3: #{transformer_seq_forward.13} parent=0 // pred_check_branch
    %8 = sbr.rel (0) target = $region5
  $region4: #{transformer_seq_forward.13} parent=0 // pred_region
    _
  $region5: #{transformer_seq_forward.13} parent=0 // pred_fallthru
    _
  // Predicated region
  $region6: #{transformer_seq_forward.13} parent=0 // pred_check
    _
  $region7: #{transformer_seq_forward.13} parent=0 // pred_check_branch
    %10 = sbr.rel (0) target = $region9
  $region8: #{transformer_seq_forward.13} parent=0 // pred_region
    _
  $region9: #{transformer_seq_forward.13} parent=0 // pred_fallthru
    _
  %v12 = vld [vmem:[%s0] sm:$0xf]
  %v13 = vld [vmem:[%s0 + $0x4] sm:$0xf]
  %v14 = vld [vmem:[%s0 + $0x8] sm:$0xf]
  %v15 = vld [vmem:[%s0 + $0xc] sm:$0xf]
  %v16 = vld [vmem:[%s1] sm:$0xf]
  %v17 = vld [vmem:[%s1 + $0x4] sm:$0xf]
  %v18 = vld [vmem:[%s1 + $0x8] sm:$0xf]
  %v19 = vld [vmem:[%s1 + $0xc] sm:$0xf]
  %v24 = vunpack.c.l.b16 %v12
  %v25 = vunpack.c.l.b16 %v13
  %v26 = vunpack.c.l.b16 %v14
  %v27 = vunpack.c.l.b16 %v15
  %v28 = vpack.c.b16 %v25, %v24
  %v29 = vpack.c.b16 %v27, %v26
  %v34 = vunpack.c.l.b16 %v16
  %v35 = vunpack.c.l.b16 %v17
  %v36 = vunpack.c.l.b16 %v18
  %v37 = vunpack.c.l.b16 %v19
  %v38 = vpack.c.b16 %v35, %v34
  %v39 = vpack.c.b16 %v37, %v36
  %vm42 = vcmask 261120
  %v44 = vsel %vm42, %v28, 0
  %v47 = vsel %vm42, %v29, 0
  %49 = vmatpush.bf16.msra.mxu0 0
  %50 = vmatpush.bf16.msra.mxu0 0
  %51 = vmatpush.bf16.msra.mxu0 0
  %52 = vmatpush.bf16.msra.mxu0 0
  %53 = vmatpush.bf16.msra.mxu0 0
  %54 = vmatpush.bf16.msra.mxu0 0
  %55 = vmatpush.bf16.msra.mxu0 %v39
  %56 = vmatpush.bf16.msra.mxu0 %v38
  %57 = vmatmul.bf16.gmra.mxu0 %v44
  %v58 = vpop.f32.mrf.mxu0
  %v59 = vadd.f32 0.0, %v58
  %v60 = vpop.f32.mrf.mxu0
  %v61 = vadd.f32 0.0, %v60
  %62 = vmatmul.bf16.gmra.mxu0 %v47
  %v63 = vpop.f32.mrf.mxu0
  %v64 = vadd.f32 0.0, %v63
  %v65 = vpop.f32.mrf.mxu0
  %v66 = vadd.f32 0.0, %v65
  %67 = vdwg.mxu0
  %v68 = vpack.c.bf16 %v59, %v59
  %v69 = vpack.c.bf16 %v61, %v61
  %v70 = vpack.c.bf16 %v64, %v64
  %v71 = vpack.c.bf16 %v66, %v66
  %vm72 = vcmask 257024
  %73 = vst.msk [vmem:[%s2] sm:$0xf] %vm72, %v68
  %74 = vst.msk [vmem:[%s2 + $0x4] sm:$0xf] %vm72, %v69
  %75 = vst.msk [vmem:[%s2 + $0x8] sm:$0xf] %vm72, %v70
  %76 = vst.msk [vmem:[%s2 + $0xc] sm:$0xf] %vm72, %v71
  // Predicated region
  $region10: #{transformer_seq_forward.13} parent=0 // pred_check
    _
  $region11: #{transformer_seq_forward.13} parent=0 // pred_check_branch
    %78 = sbr.rel (0) target = $region13
  $region12: #{transformer_seq_forward.13} parent=0 // pred_region
    _
  $region13: #{transformer_seq_forward.13} parent=0 // pred_fallthru
    _
  // Predicated region
  $region14: #{transformer_seq_forward.13} parent=0 // pred_check
    _
  $region15: #{transformer_seq_forward.13} parent=0 // pred_check_branch
    %80 = sbr.rel (0) target = $region17
  $region16: #{transformer_seq_forward.13} parent=0 // pred_region
    _
  $region17: #{transformer_seq_forward.13} parent=0 // pred_fallthru
    _

// kernel: transformer_seq_forward.16
$region0: #{transformer_seq_forward.16}
  #allocation0 [shape = 'u32[]', space=smem, size = 0x4, offset = 0x4, fixed_abs, tag = 'smem constant byte address 0x4 - core index']
  #allocation1 [shape = 'u32[72,128]{1,0:T(1,128)}', space=vmem, size = 0x9000, scoped, tag = 'internal scratch']
  %s0 = inlined_call_operand.vmem [shape: bf16[2,8,32], index: 0, kind: input, shape index: {}]
  %s1 = inlined_call_operand.vmem [shape: bf16[2,24,64], index: 1, kind: input, shape index: {}]
  %s2 = inlined_call_operand.vmem [shape: f32[2,16,24], index: 2, kind: input, shape index: {}]
  %s3 = inlined_call_operand.vmem [shape: bf16[2,8,32], index: 3, kind: output, shape index: {}]
  %s4 = sld [smem:[#allocation0]]
  $region45: #{transformer_seq_forward.16} parent=0
    _
  %s6 = ssub.s32 1, %s4
  %s7 = scalar_select 0, %s6, %s4
  loop: start=0, step=1, limit=4
  $region2: #{transformer_seq_forward.16} parent=0 // loop_pre_header
    _
  $region3: #{transformer_seq_forward.16} parent=0 // loop_header
    %s9 = sphi 0, %s13
    %p10 = scmp.ge.s32.totalorder %s9, 4
    %s19 = sphi 0, %s21
    %s22 = sphi 0, %s19
    %s23 = sphi 0, %s22
    %s39 = sphi 0, %s23
    %s45 = sphi 0, %s47
    %s48 = sphi 0, %s45
    %s49 = sphi 0, %s48
    %s65 = sphi 0, %s49
    %s71 = sphi 0, %s73
    %s74 = sphi 0, %s71
    %s75 = sphi 0, %s74
    %s91 = sphi 0, %s75
    %s97 = sphi 0, %s99
    %s100 = sphi 0, %s97
    %s101 = sphi 0, %s100
    %s117 = sphi 0, %s101
  $region4: #{transformer_seq_forward.16} parent=0 // loop_header_branch
    %12 = sbr.rel (%p10) target = $region8
  $region5: #{transformer_seq_forward.16} parent=0 // loop_body
    %s14 = ssub.s32 %s9, 1
    %s15 = ssub.s32 %s9, 2
    %s16 = sadd.s32 %s9, 1
    %s17 = ssub.s32 %s9, %s16
    %p18 = scmp.eq.s32.totalorder %s17, 0
    %s20 = sadd.s32 %s19, 1
    %s21 = scalar_select %p18, %s19, %s20
    %p24 = pneg %p18
    %p25 = scmp.eq.s32.totalorder %s9, 1
    %p26 = por %p24, %p25
    %p27 = scmp.ne.s32.totalorder %s19, %s22
    %p28 = scmp.eq.s32.totalorder %s9, 0
    %p29 = por %p27, %p28
    %p30 = scmp.ne.s32.totalorder %s19, %s22
    %p31 = scmp.eq.s32.totalorder %s14, 1
    %p32 = por %p30, %p31
    %p33 = scmp.ne.s32.totalorder %s22, %s23
    %p34 = scmp.eq.s32.totalorder %s14, 0
    %p35 = por %p33, %p34
    %p36 = scmp.ne.s32.totalorder %s22, %s23
    %p37 = scmp.eq.s32.totalorder %s15, 1
    %p38 = por %p36, %p37
    %p40 = scmp.ne.s32.totalorder %s23, %s39
    %p41 = scmp.eq.s32.totalorder %s15, 0
    %p42 = por %p40, %p41
    %s43 = ssub.s32 %s9, %s16
    %p44 = scmp.eq.s32.totalorder %s43, 0
    %s46 = sadd.s32 %s45, 1
    %s47 = scalar_select %p44, %s45, %s46
    %p50 = pneg %p44
    %p51 = scmp.eq.s32.totalorder %s9, 1
    %p52 = por %p50, %p51
    %p53 = scmp.ne.s32.totalorder %s45, %s48
    %p54 = scmp.eq.s32.totalorder %s9, 0
    %p55 = por %p53, %p54
    %p56 = scmp.ne.s32.totalorder %s45, %s48
    %p57 = scmp.eq.s32.totalorder %s14, 1
    %p58 = por %p56, %p57
    %p59 = scmp.ne.s32.totalorder %s48, %s49
    %p60 = scmp.eq.s32.totalorder %s14, 0
    %p61 = por %p59, %p60
    %p62 = scmp.ne.s32.totalorder %s48, %s49
    %p63 = scmp.eq.s32.totalorder %s15, 1
    %p64 = por %p62, %p63
    %p66 = scmp.ne.s32.totalorder %s49, %s65
    %p67 = scmp.eq.s32.totalorder %s15, 0
    %p68 = por %p66, %p67
    %s69 = ssub.s32 %s9, %s16
    %p70 = scmp.eq.s32.totalorder %s69, 0
    %s72 = sadd.s32 %s71, 1
    %s73 = scalar_select %p70, %s71, %s72
    %p76 = pneg %p70
    %p77 = scmp.eq.s32.totalorder %s9, 1
    %p78 = por %p76, %p77
    %p79 = scmp.ne.s32.totalorder %s71, %s74
    %p80 = scmp.eq.s32.totalorder %s9, 0
    %p81 = por %p79, %p80
    %p82 = scmp.ne.s32.totalorder %s71, %s74
    %p83 = scmp.eq.s32.totalorder %s14, 1
    %p84 = por %p82, %p83
    %p85 = scmp.ne.s32.totalorder %s74, %s75
    %p86 = scmp.eq.s32.totalorder %s14, 0
    %p87 = por %p85, %p86
    %p88 = scmp.ne.s32.totalorder %s74, %s75
    %p89 = scmp.eq.s32.totalorder %s15, 1
    %p90 = por %p88, %p89
    %p92 = scmp.ne.s32.totalorder %s75, %s91
    %p93 = scmp.eq.s32.totalorder %s15, 0
    %p94 = por %p92, %p93
    %s95 = ssub.s32 %s9, %s16
    %p96 = scmp.eq.s32.totalorder %s95, 0
    %s98 = sadd.s32 %s97, 1
    %s99 = scalar_select %p96, %s97, %s98
    %p102 = pneg %p96
    %p103 = scmp.eq.s32.totalorder %s9, 1
    %p104 = por %p102, %p103
    %p105 = scmp.ne.s32.totalorder %s97, %s100
    %p106 = scmp.eq.s32.totalorder %s9, 0
    %p107 = por %p105, %p106
    %p108 = scmp.ne.s32.totalorder %s97, %s100
    %p109 = scmp.eq.s32.totalorder %s14, 1
    %p110 = por %p108, %p109
    %p111 = scmp.ne.s32.totalorder %s100, %s101
    %p112 = scmp.eq.s32.totalorder %s14, 0
    %p113 = por %p111, %p112
    %p114 = scmp.ne.s32.totalorder %s100, %s101
    %p115 = scmp.eq.s32.totalorder %s15, 1
    %p116 = por %p114, %p115
    %p118 = scmp.ne.s32.totalorder %s101, %s117
    %p119 = scmp.eq.s32.totalorder %s15, 0
    %p120 = por %p118, %p119
    %p121 = scmp.le.s32.totalorder 1, %s9
    %p122 = scmp.lt.s32.totalorder %s9, 3
    %p123 = pnand %p121, %p122
    %p124 = pneg %p123
    // Predicated region
    $region9: #{transformer_seq_forward.16} parent=5 // pred_check
      _
    $region10: #{transformer_seq_forward.16} parent=5 // pred_check_branch
      %126 = sbr.rel (%p123) target = $region12
    $region11: #{transformer_seq_forward.16} parent=5 // pred_region
      %s127 = ssub.s32 %s9, 1
    $region12: #{transformer_seq_forward.16} parent=5 // pred_fallthru
      _
    %p128 = scmp.lt.s32.totalorder %s9, 2
    // Predicated region
    $region13: #{transformer_seq_forward.16} parent=5 // pred_check
      %p129 = pneg %p128
    $region14: #{transformer_seq_forward.16} parent=5 // pred_check_branch
      %131 = sbr.rel (%p129) target = $region16
    $region15: #{transformer_seq_forward.16} parent=5 // pred_region
      // Predicated region
      $region17: #{transformer_seq_forward.16} parent=15 // pred_check
        %p132 = pneg %p29
      $region18: #{transformer_seq_forward.16} parent=15 // pred_check_branch
        %134 = sbr.rel (%p132) target = $region20
      $region19: #{transformer_seq_forward.16} parent=15 // pred_region
        %p135 = scmp.lt.s32.totalorder %s9, 1
        %s136 = scalar_select %p135, %s9, 1
        %s137 = smul.addr %s136, 4
        %s138 = scalar_lea.vmem %s0, %s137
      $region20: #{transformer_seq_forward.16} parent=15 // pred_fallthru
        _
      // Predicated region
      $region21: #{transformer_seq_forward.16} parent=15 // pred_check
        %p139 = pneg %p55
      $region22: #{transformer_seq_forward.16} parent=15 // pred_check_branch
        %141 = sbr.rel (%p139) target = $region24
      $region23: #{transformer_seq_forward.16} parent=15 // pred_region
        %p142 = scmp.lt.s32.totalorder %s9, 1
        %s143 = scalar_select %p142, %s9, 1
        %s144 = smul.addr %s143, 3
        %s145 = smul.addr %s144, 4
        %s146 = scalar_lea.vmem %s1, %s145
      $region24: #{transformer_seq_forward.16} parent=15 // pred_fallthru
        _
      // Predicated region
      $region25: #{transformer_seq_forward.16} parent=15 // pred_check
        %p147 = pneg %p81
      $region26: #{transformer_seq_forward.16} parent=15 // pred_check_branch
        %149 = sbr.rel (%p147) target = $region28
      $region27: #{transformer_seq_forward.16} parent=15 // pred_region
        %p150 = scmp.lt.s32.totalorder %s9, 1
        %s151 = scalar_select %p150, %s9, 1
        %s152 = smul.addr %s151, 2
        %s153 = smul.addr %s152, 8
        %s154 = scalar_lea.vmem %s2, %s153
      $region28: #{transformer_seq_forward.16} parent=15 // pred_fallthru
        _
    $region16: #{transformer_seq_forward.16} parent=5 // pred_fallthru
      _
    %p155 = scmp.le.s32.totalorder 1, %s9
    %p156 = scmp.lt.s32.totalorder %s9, 3
    %p157 = pnand %p155, %p156
    %p158 = pneg %p157
    // Predicated region
    $region29: #{transformer_seq_forward.16} parent=5 // pred_check
      _
    $region30: #{transformer_seq_forward.16} parent=5 // pred_check_branch
      %160 = sbr.rel (%p157) target = $region32
    $region31: #{transformer_seq_forward.16} parent=5 // pred_region
      %s161 = ssub.s32 %s9, 1
      %p162 = scmp.lt.s32.totalorder %s14, 1
      %s163 = scalar_select %p162, %s14, 1
      %s164 = smul.addr %s163, 4
      %s165 = scalar_lea.vmem %s0, %s164
      %p166 = pneg %p35
      %p167 = pneg %p32
      %p168 = scmp.lt.s32.totalorder %s14, 1
      %s169 = scalar_select %p168, %s14, 1
      %s170 = smul.addr %s169, 3
      %s171 = smul.addr %s170, 4
      %s172 = scalar_lea.vmem %s1, %s171
      %p173 = pneg %p61
      %p174 = pneg %p58
      %p175 = scmp.lt.s32.totalorder %s14, 1
      %s176 = scalar_select %p175, %s14, 1
      %s177 = smul.addr %s176, 2
      %s178 = smul.addr %s177, 8
      %s179 = scalar_lea.vmem %s2, %s178
      %p180 = pneg %p87
      %p181 = pneg %p84
      %p182 = pneg %p113
      %p183 = pneg %p110
      %p184 = scmp.lt.s32.totalorder %s14, 1
      %s185 = scalar_select %p184, %s14, 1
      %s186 = smul.addr %s185, 4
      %s187 = scalar_lea.vmem %s3, %s186
      %p188 = scmp.lt.s32.totalorder %s14, 1
      %s189 = scalar_select %p188, %s14, 1
      %s190 = smul.addr %s189, 4
      %s191 = scalar_lea.vmem %s0, %s190
      %p192 = scmp.lt.s32.totalorder %s14, 1
      %s193 = scalar_select %p192, %s14, 1
      %s194 = smul.addr %s193, 3
      %s195 = smul.addr %s194, 4
      %s196 = scalar_lea.vmem %s1, %s195
      %p197 = scmp.lt.s32.totalorder %s14, 1
      %s198 = scalar_select %p197, %s14, 1
      %s199 = smul.addr %s198, 2
      %s200 = smul.addr %s199, 8
      %s201 = scalar_lea.vmem %s2, %s200
      %p202 = scmp.lt.s32.totalorder %s14, 1
      %s203 = scalar_select %p202, %s14, 1
      %s204 = smul.addr %s203, 4
      %s205 = scalar_lea.vmem %s3, %s204
      %v207 = vld [vmem:[%s191] sm:$0xf]
      %v208 = vld [vmem:[%s196] sm:$0xf]
      %v209 = vld [vmem:[%s196 + $0x4] sm:$0xf]
      %v210 = vld [vmem:[%s196 + $0x8] sm:$0xf]
      %v211 = vld [vmem:[%s201] sm:$0xff]
      %v212 = vld [vmem:[%s201 + $0x8] sm:$0xff]
      %v213 = vlaneseq
      %v214 = vshrl.u32 %v213, 7
      %v215 = vlaneseq
      %v216 = vand.u32 %v215, 127
      %vm217 = vcmp.ge.s32.totalorder %v216, %v214
      %v218 = vadd.s32 %v214, 16
      %vm219 = vcmp.lt.s32.totalorder %v216, %v218
      %vm220 = vmand %vm217, %vm219
      %v224 = vunpack.c.l.b16 %v208
      %v225 = vunpack.c.l.b16 %v209
      %v226 = vunpack.c.l.b16 %v210
      %v227 = vpack.c.b16 %v225, %v224
      %v228 = vpack.c.b16 %v226, %v226
      %vm229 = vcmask 130048
      %v231 = vsel %vm229, %v207, 0
      %v234 = vsel %vm229, %v227, 0
      %v237 = vsel %vm229, %v228, 0
      %239 = vmatpush.bf16.xpose.msra.mxu0 0
      %240 = vmatpush.bf16.xpose.msra.mxu0 0
      %241 = vmatpush.bf16.xpose.msra.mxu0 0
      %242 = vmatpush.bf16.xpose.msra.mxu0 0
      %243 = vmatpush.bf16.xpose.msra.mxu0 0
      %244 = vmatpush.bf16.xpose.msra.mxu0 0
      %245 = vmatpush.bf16.xpose.msra.mxu0 %v237
      %246 = vmatpush.bf16.xpose.msra.mxu0 %v234
      %247 = vmatmul.bf16.gmra.mxu0 %v231
      %v248 = vpop.f32.mrf.mxu0
      %v249 = vadd.f32 %v211, %v248
      %v250 = vpop.f32.mrf.mxu0
      %251 = vdwg.mxu0
      %v252 = vmul.f32 %v249, 0.25
      %v253 = vsel %vm220, %v252, -1e+30
      %vm254 = vcmask 195584
      %v255 = vsel %vm254, %v253, -inf
      %256 = vmax.xlane.f32.xlu0 %v255
      %v257 = vpop.xlane.xlu0 %256
      %v258 = vsub.f32 %v253, %v257
      %v259 = vmul.f32 %v258, 1.442695
      %v260 = vpow.pop %v259
      %v261 = vsel %vm254, %v260, 0.0
      %262 = vadd.xlane.f32.xlu0 %v261
      %v263 = vpop.xlane.xlu0 %262
      %v264 = vrcp.pop %v263
      %v265 = vmul.f32 %v260, %v264
      %v266 = vpack.c.bf16 %v265, %v265
      %267 = vrot.lane.b32.xlu0 %v227, 96
      %v268 = vpop.permute.xlu0 %267
      %269 = vrot.lane.b32.xlu0 %v228, 96
      %v270 = vpop.permute.xlu0 %269
      %v273 = vsel %vm254, %v266, 0
      %vm275 = vcmask 1043456
      %v277 = vsel %vm275, %v270, 0
      %279 = vmatpush.bf16.msra.mxu0 0
      %280 = vmatpush.bf16.msra.mxu0 0
      %281 = vmatpush.bf16.msra.mxu0 0
      %282 = vmatpush.bf16.msra.mxu0 0
      %283 = vmatpush.bf16.msra.mxu0 0
      %284 = vmatpush.bf16.msra.mxu0 0
      %285 = vmatpush.bf16.msra.mxu0 %v277
      %286 = vmatpush.bf16.msra.mxu0 %v268
      %287 = vmatmul.bf16.gmra.mxu0 %v273
      %v288 = vpop.f32.mrf.mxu0
      %v289 = vadd.f32 0.0, %v288
      %v290 = vpop.f32.mrf.mxu0
      %291 = vdwg.mxu0
      %v292 = vpack.c.bf16 %v289, %v289
      %vm293 = vcmask 125952
      %294 = vst.msk [vmem:[%s205] sm:$0xf] %vm293, %v292
      %v296 = vunpack.c.l.b16 %v207
      %v297 = vpack.c.b16 %v296, %v296
      %298 = vrot.lane.b32.xlu0 %v297, 112
      %v299 = vpop.permute.xlu0 %298
      %300 = vrot.lane.b32.xlu0 %v227, 112
      %v301 = vpop.permute.xlu0 %300
      %302 = vrot.lane.b32.xlu0 %v228, 112
      %v303 = vpop.permute.xlu0 %302
      %v305 = vsel %vm229, %v299, 0
      %v308 = vsel %vm229, %v301, 0
      %v311 = vsel %vm229, %v303, 0
      %313 = vmatpush.bf16.xpose.msra.mxu0 0
      %314 = vmatpush.bf16.xpose.msra.mxu0 0
      %315 = vmatpush.bf16.xpose.msra.mxu0 0
      %316 = vmatpush.bf16.xpose.msra.mxu0 0
      %317 = vmatpush.bf16.xpose.msra.mxu0 0
      %318 = vmatpush.bf16.xpose.msra.mxu0 0
      %319 = vmatpush.bf16.xpose.msra.mxu0 %v311
      %320 = vmatpush.bf16.xpose.msra.mxu0 %v308
      %321 = vmatmul.bf16.gmra.mxu0 %v305
      %v322 = vpop.f32.mrf.mxu0
      %v323 = vadd.f32 %v212, %v322
      %v324 = vpop.f32.mrf.mxu0
      %325 = vdwg.mxu0
      %v326 = vmul.f32 %v323, 0.25
      %v327 = vsel %vm220, %v326, -1e+30
      %v328 = vsel %vm254, %v327, -inf
      %329 = vmax.xlane.f32.xlu0 %v328
      %v330 = vpop.xlane.xlu0 %329
      %v331 = vsub.f32 %v327, %v330
      %v332 = vmul.f32 %v331, 1.442695
      %v333 = vpow.pop %v332
      %v334 = vsel %vm254, %v333, 0.0
      %335 = vadd.xlane.f32.xlu0 %v334
      %v336 = vpop.xlane.xlu0 %335
      %v337 = vrcp.pop %v336
      %v338 = vmul.f32 %v333, %v337
      %v339 = vpack.c.bf16 %v338, %v338
      %340 = vrot.lane.b32.xlu0 %v227, 80
      %v341 = vpop.permute.xlu0 %340
      %342 = vrot.lane.b32.xlu0 %v228, 80
      %v343 = vpop.permute.xlu0 %342
      %v346 = vsel %vm254, %v339, 0
      %v349 = vsel %vm275, %v343, 0
      %351 = vmatpush.bf16.msra.mxu0 0
      %352 = vmatpush.bf16.msra.mxu0 0
      %353 = vmatpush.bf16.msra.mxu0 0
      %354 = vmatpush.bf16.msra.mxu0 0
      %355 = vmatpush.bf16.msra.mxu0 0
      %356 = vmatpush.bf16.msra.mxu0 0
      %357 = vmatpush.bf16.msra.mxu0 %v349
      %358 = vmatpush.bf16.msra.mxu0 %v341
      %359 = vmatmul.bf16.gmra.mxu0 %v346
      %v360 = vpop.f32.mrf.mxu0
      %v361 = vadd.f32 0.0, %v360
      %v362 = vpop.f32.mrf.mxu0
      %363 = vdwg.mxu0
      %v364 = vpack.c.bf16 %v361, %v361
      %366 = vrot.lane.b32.xlu0 %v364, 16
      %v367 = vpop.permute.xlu0 %366
      %vm369 = vcmask 257152
      %370 = vst.msk [vmem:[%s205] sm:$0xf] %vm369, %v367
      %p371 = scmp.lt.s32.totalorder %s14, 1
      %s372 = scalar_select %p371, %s14, 1
      %s373 = smul.addr %s372, 4
      %s374 = scalar_lea.vmem %s3, %s373
      // Predicated region
      $region33: #{transformer_seq_forward.16} parent=31 // pred_check
        %p375 = pneg %p110
      $region34: #{transformer_seq_forward.16} parent=31 // pred_check_branch
        %377 = sbr.rel (%p375) target = $region36
      $region35: #{transformer_seq_forward.16} parent=31 // pred_region
        _
      $region36: #{transformer_seq_forward.16} parent=31 // pred_fallthru
        _
    $region32: #{transformer_seq_forward.16} parent=5 // pred_fallthru
      _
    %p378 = scmp.le.s32.totalorder 2, %s9
    // Predicated region
    $region37: #{transformer_seq_forward.16} parent=5 // pred_check
      %p379 = pneg %p378
    $region38: #{transformer_seq_forward.16} parent=5 // pred_check_branch
      %381 = sbr.rel (%p379) target = $region40
    $region39: #{transformer_seq_forward.16} parent=5 // pred_region
      %s382 = ssub.s32 %s9, 2
      // Predicated region
      $region41: #{transformer_seq_forward.16} parent=39 // pred_check
        %p383 = pneg %p116
      $region42: #{transformer_seq_forward.16} parent=39 // pred_check_branch
        %385 = sbr.rel (%p383) target = $region44
      $region43: #{transformer_seq_forward.16} parent=39 // pred_region
        %p386 = scmp.lt.s32.totalorder %s15, 1
        %s387 = scalar_select %p386, %s15, 1
        %s388 = smul.addr %s387, 4
        %s389 = scalar_lea.vmem %s3, %s388
      $region44: #{transformer_seq_forward.16} parent=39 // pred_fallthru
        _
    $region40: #{transformer_seq_forward.16} parent=5 // pred_fallthru
      _
  $region6: #{transformer_seq_forward.16} parent=0 // loop_footer
    %s13 = sadd.s32 1, %s9
  $region7: #{transformer_seq_forward.16} parent=0 // loop_footer_branch
    %8 = sbr.rel target = $region3
  $region8: #{transformer_seq_forward.16} parent=0 // loop_exit
    _

// kernel: transformer_seq_forward.25
$region0: #{transformer_seq_forward.25}
  #allocation0 [shape = 'u32[]', space=smem, size = 0x4, offset = 0x4, fixed_abs, tag = 'smem constant byte address 0x4 - core index']
  #allocation1 [shape = 'u32[72,128]{1,0:T(1,128)}', space=vmem, size = 0x9000, scoped, tag = 'internal scratch']
  %s0 = inlined_call_operand.vmem [shape: bf16[32,32], index: 0, kind: input, shape index: {}]
  %s1 = inlined_call_operand.vmem [shape: bf16[32,64], index: 1, kind: input, shape index: {}]
  %s2 = inlined_call_operand.vmem [shape: f32[1,64], index: 2, kind: input, shape index: {}]
  %s3 = inlined_call_operand.vmem [shape: f32[32,64], index: 3, kind: output, shape index: {}]
  %s4 = sld [smem:[#allocation0]]
  $region22: #{transformer_seq_forward.25} parent=0
    _
  %s6 = ssub.s32 1, %s4
  %s7 = scalar_select 0, %s6, %s4
  // Predicated region
  $region2: #{transformer_seq_forward.25} parent=0 // pred_check
    _
  $region3: #{transformer_seq_forward.25} parent=0 // pred_check_branch
    %9 = sbr.rel (0) target = $region5
  $region4: #{transformer_seq_forward.25} parent=0 // pred_region
    _
  $region5: #{transformer_seq_forward.25} parent=0 // pred_fallthru
    _
  // Predicated region
  $region6: #{transformer_seq_forward.25} parent=0 // pred_check
    _
  $region7: #{transformer_seq_forward.25} parent=0 // pred_check_branch
    %11 = sbr.rel (0) target = $region9
  $region8: #{transformer_seq_forward.25} parent=0 // pred_region
    _
  $region9: #{transformer_seq_forward.25} parent=0 // pred_fallthru
    _
  // Predicated region
  $region10: #{transformer_seq_forward.25} parent=0 // pred_check
    _
  $region11: #{transformer_seq_forward.25} parent=0 // pred_check_branch
    %13 = sbr.rel (0) target = $region13
  $region12: #{transformer_seq_forward.25} parent=0 // pred_region
    _
  $region13: #{transformer_seq_forward.25} parent=0 // pred_fallthru
    _
  %v15 = vld [vmem:[%s0] sm:$0xf]
  %v16 = vld [vmem:[%s0 + $0x4] sm:$0xf]
  %v17 = vld [vmem:[%s0 + $0x8] sm:$0xf]
  %v18 = vld [vmem:[%s0 + $0xc] sm:$0xf]
  %v19 = vld [vmem:[%s1] sm:$0xf]
  %v20 = vld [vmem:[%s1 + $0x4] sm:$0xf]
  %v21 = vld [vmem:[%s1 + $0x8] sm:$0xf]
  %v22 = vld [vmem:[%s1 + $0xc] sm:$0xf]
  %v23 = vld [vmem:[%s2] sm:$0x1]
  %v25 = vperm.slane %v23, 0
  %v31 = vunpack.c.l.b16 %v15
  %v32 = vunpack.c.l.b16 %v16
  %v33 = vunpack.c.l.b16 %v17
  %v34 = vunpack.c.l.b16 %v18
  %v35 = vpack.c.b16 %v32, %v31
  %v36 = vpack.c.b16 %v34, %v33
  %v41 = vunpack.c.l.b16 %v19
  %v42 = vunpack.c.l.b16 %v20
  %v43 = vunpack.c.l.b16 %v21
  %v44 = vunpack.c.l.b16 %v22
  %v45 = vpack.c.b16 %v42, %v41
  %v46 = vpack.c.b16 %v44, %v43
  %vm49 = vcmask 261120
  %v51 = vsel %vm49, %v35, 0
  %v54 = vsel %vm49, %v36, 0
  %56 = vmatpush.bf16.msra.mxu0 0
  %57 = vmatpush.bf16.msra.mxu0 0
  %58 = vmatpush.bf16.msra.mxu0 0
  %59 = vmatpush.bf16.msra.mxu0 0
  %60 = vmatpush.bf16.msra.mxu0 0
  %61 = vmatpush.bf16.msra.mxu0 0
  %62 = vmatpush.bf16.msra.mxu0 %v46
  %63 = vmatpush.bf16.msra.mxu0 %v45
  %64 = vmatmul.bf16.gmra.mxu0 %v51
  %v65 = vpop.f32.mrf.mxu0
  %v66 = vadd.f32 %v25, %v65
  %v67 = vpop.f32.mrf.mxu0
  %v68 = vadd.f32 %v25, %v67
  %69 = vmatmul.bf16.gmra.mxu0 %v54
  %v70 = vpop.f32.mrf.mxu0
  %v71 = vadd.f32 %v25, %v70
  %v72 = vpop.f32.mrf.mxu0
  %v73 = vadd.f32 %v25, %v72
  %74 = vdwg.mxu0
  %vm75 = vcmask 523264
  %v76 = vsel %vm75, %v66, -inf
  %77 = vmax.xlane.f32.xlu0 %v76
  %v78 = vpop.xlane.xlu0 %77
  %v79 = vsel %vm75, %v68, -inf
  %80 = vmax.xlane.f32.xlu0 %v79
  %v81 = vpop.xlane.xlu0 %80
  %v82 = vsel %vm75, %v71, -inf
  %83 = vmax.xlane.f32.xlu0 %v82
  %v84 = vpop.xlane.xlu0 %83
  %v85 = vsel %vm75, %v73, -inf
  %86 = vmax.xlane.f32.xlu0 %v85
  %v87 = vpop.xlane.xlu0 %86
  %v88 = vsub.f32 %v66, %v78
  %v89 = vsub.f32 %v68, %v81
  %v90 = vsub.f32 %v71, %v84
  %v91 = vsub.f32 %v73, %v87
  %v92 = vmul.f32 %v88, 1.442695
  %v93 = vpow.pop %v92
  %v94 = vmul.f32 %v89, 1.442695
  %v95 = vpow.pop %v94
  %v96 = vmul.f32 %v90, 1.442695
  %v97 = vpow.pop %v96
  %v98 = vmul.f32 %v91, 1.442695
  %v99 = vpow.pop %v98
  %v100 = vsel %vm75, %v93, 0.0
  %101 = vadd.xlane.f32.xlu0 %v100
  %v102 = vpop.xlane.xlu0 %101
  %v103 = vsel %vm75, %v95, 0.0
  %104 = vadd.xlane.f32.xlu0 %v103
  %v105 = vpop.xlane.xlu0 %104
  %v106 = vsel %vm75, %v97, 0.0
  %107 = vadd.xlane.f32.xlu0 %v106
  %v108 = vpop.xlane.xlu0 %107
  %v109 = vsel %vm75, %v99, 0.0
  %110 = vadd.xlane.f32.xlu0 %v109
  %v111 = vpop.xlane.xlu0 %110
  %v112 = vlog2.pop %v102
  %v113 = vmul.f32 %v112, 0.6931472
  %v114 = vlog2.pop %v105
  %v115 = vmul.f32 %v114, 0.6931472
  %v116 = vlog2.pop %v108
  %v117 = vmul.f32 %v116, 0.6931472
  %v118 = vlog2.pop %v111
  %v119 = vmul.f32 %v118, 0.6931472
  %v120 = vsub.f32 %v88, %v113
  %v121 = vsub.f32 %v89, %v115
  %v122 = vsub.f32 %v90, %v117
  %v123 = vsub.f32 %v91, %v119
  %124 = vst.msk [vmem:[%s3] sm:$0xff] %vm75, %v120
  %125 = vst.msk [vmem:[%s3 + $0x8] sm:$0xff] %vm75, %v121
  %126 = vst.msk [vmem:[%s3 + $0x10] sm:$0xff] %vm75, %v122
  %127 = vst.msk [vmem:[%s3 + $0x18] sm:$0xff] %vm75, %v123
  // Predicated region
  $region14: #{transformer_seq_forward.25} parent=0 // pred_check
    _
  $region15: #{transformer_seq_forward.25} parent=0 // pred_check_branch
    %129 = sbr.rel (0) target = $region17
  $region16: #{transformer_seq_forward.25} parent=0 // pred_region
    _
  $region17: #{transformer_seq_forward.25} parent=0 // pred_fallthru
    _
  // Predicated region
  $region18: #{transformer_seq_forward.25} parent=0 // pred_check
    _
  $region19: #{transformer_seq_forward.25} parent=0 // pred_check_branch
    %131 = sbr.rel (0) target = $region21
  $region20: #{transformer_seq_forward.25} parent=0 // pred_region
    _
  $region21: #{transformer_seq_forward.25} parent=0 // pred_fallthru
    _

// kernel: transformer_seq_forward.18
$region0: #{transformer_seq_forward.18}
  #allocation0 [shape = 'u32[]', space=smem, size = 0x4, offset = 0x4, fixed_abs, tag = 'smem constant byte address 0x4 - core index']
  #allocation1 [shape = 'u32[72,128]{1,0:T(1,128)}', space=vmem, size = 0x9000, scoped, tag = 'internal scratch']
  %s0 = inlined_call_operand.vmem [shape: bf16[32,32], index: 0, kind: input, shape index: {}]
  %s1 = inlined_call_operand.vmem [shape: bf16[32,48], index: 1, kind: input, shape index: {}]
  %s2 = inlined_call_operand.vmem [shape: f32[1,48], index: 2, kind: input, shape index: {}]
  %s3 = inlined_call_operand.vmem [shape: bf16[48,32], index: 3, kind: input, shape index: {}]
  %s4 = inlined_call_operand.vmem [shape: f32[1,32], index: 4, kind: input, shape index: {}]
  %s5 = inlined_call_operand.vmem [shape: f32[1,32], index: 5, kind: input, shape index: {}]
  %s6 = inlined_call_operand.vmem [shape: f32[1,32], index: 6, kind: input, shape index: {}]
  %s7 = inlined_call_operand.vmem [shape: bf16[32,32], index: 7, kind: output, shape index: {}]
  %s8 = sld [smem:[#allocation0]]
  $region38: #{transformer_seq_forward.18} parent=0
    _
  %s10 = ssub.s32 1, %s8
  %s11 = scalar_select 0, %s10, %s8
  // Predicated region
  $region2: #{transformer_seq_forward.18} parent=0 // pred_check
    _
  $region3: #{transformer_seq_forward.18} parent=0 // pred_check_branch
    %13 = sbr.rel (0) target = $region5
  $region4: #{transformer_seq_forward.18} parent=0 // pred_region
    _
  $region5: #{transformer_seq_forward.18} parent=0 // pred_fallthru
    _
  // Predicated region
  $region6: #{transformer_seq_forward.18} parent=0 // pred_check
    _
  $region7: #{transformer_seq_forward.18} parent=0 // pred_check_branch
    %15 = sbr.rel (0) target = $region9
  $region8: #{transformer_seq_forward.18} parent=0 // pred_region
    _
  $region9: #{transformer_seq_forward.18} parent=0 // pred_fallthru
    _
  // Predicated region
  $region10: #{transformer_seq_forward.18} parent=0 // pred_check
    _
  $region11: #{transformer_seq_forward.18} parent=0 // pred_check_branch
    %17 = sbr.rel (0) target = $region13
  $region12: #{transformer_seq_forward.18} parent=0 // pred_region
    _
  $region13: #{transformer_seq_forward.18} parent=0 // pred_fallthru
    _
  // Predicated region
  $region14: #{transformer_seq_forward.18} parent=0 // pred_check
    _
  $region15: #{transformer_seq_forward.18} parent=0 // pred_check_branch
    %19 = sbr.rel (0) target = $region17
  $region16: #{transformer_seq_forward.18} parent=0 // pred_region
    _
  $region17: #{transformer_seq_forward.18} parent=0 // pred_fallthru
    _
  // Predicated region
  $region18: #{transformer_seq_forward.18} parent=0 // pred_check
    _
  $region19: #{transformer_seq_forward.18} parent=0 // pred_check_branch
    %21 = sbr.rel (0) target = $region21
  $region20: #{transformer_seq_forward.18} parent=0 // pred_region
    _
  $region21: #{transformer_seq_forward.18} parent=0 // pred_fallthru
    _
  // Predicated region
  $region22: #{transformer_seq_forward.18} parent=0 // pred_check
    _
  $region23: #{transformer_seq_forward.18} parent=0 // pred_check_branch
    %23 = sbr.rel (0) target = $region25
  $region24: #{transformer_seq_forward.18} parent=0 // pred_region
    _
  $region25: #{transformer_seq_forward.18} parent=0 // pred_fallthru
    _
  // Predicated region
  $region26: #{transformer_seq_forward.18} parent=0 // pred_check
    _
  $region27: #{transformer_seq_forward.18} parent=0 // pred_check_branch
    %25 = sbr.rel (0) target = $region29
  $region28: #{transformer_seq_forward.18} parent=0 // pred_region
    _
  $region29: #{transformer_seq_forward.18} parent=0 // pred_fallthru
    _
  %v27 = vld [vmem:[%s0] sm:$0xf]
  %v28 = vld [vmem:[%s0 + $0x4] sm:$0xf]
  %v29 = vld [vmem:[%s0 + $0x8] sm:$0xf]
  %v30 = vld [vmem:[%s0 + $0xc] sm:$0xf]
  %v31 = vld [vmem:[%s1] sm:$0xf]
  %v32 = vld [vmem:[%s1 + $0x4] sm:$0xf]
  %v33 = vld [vmem:[%s1 + $0x8] sm:$0xf]
  %v34 = vld [vmem:[%s1 + $0xc] sm:$0xf]
  %v35 = vld [vmem:[%s2] sm:$0x1]
  %v37 = vperm.slane %v35, 0
  %v43 = vunpack.c.l.b16 %v27
  %v44 = vunpack.c.l.b16 %v28
  %v45 = vunpack.c.l.b16 %v29
  %v46 = vunpack.c.l.b16 %v30
  %v47 = vpack.c.b16 %v44, %v43
  %v48 = vpack.c.b16 %v46, %v45
  %v53 = vunpack.c.l.b16 %v31
  %v54 = vunpack.c.l.b16 %v32
  %v55 = vunpack.c.l.b16 %v33
  %v56 = vunpack.c.l.b16 %v34
  %v57 = vpack.c.b16 %v54, %v53
  %v58 = vpack.c.b16 %v56, %v55
  %vm61 = vcmask 261120
  %v63 = vsel %vm61, %v47, 0
  %v66 = vsel %vm61, %v48, 0
  %68 = vmatpush.bf16.msra.mxu0 0
  %69 = vmatpush.bf16.msra.mxu0 0
  %70 = vmatpush.bf16.msra.mxu0 0
  %71 = vmatpush.bf16.msra.mxu0 0
  %72 = vmatpush.bf16.msra.mxu0 0
  %73 = vmatpush.bf16.msra.mxu0 0
  %74 = vmatpush.bf16.msra.mxu0 %v58
  %75 = vmatpush.bf16.msra.mxu0 %v57
  %76 = vmatmul.bf16.gmra.mxu0 %v63
  %v77 = vpop.f32.mrf.mxu0
  %v78 = vadd.f32 %v37, %v77
  %v79 = vpop.f32.mrf.mxu0
  %v80 = vadd.f32 %v37, %v79
  %81 = vmatmul.bf16.gmra.mxu0 %v66
  %v82 = vpop.f32.mrf.mxu0
  %v83 = vadd.f32 %v37, %v82
  %v84 = vpop.f32.mrf.mxu0
  %v85 = vadd.f32 %v37, %v84
  %86 = vdwg.mxu0
  %v87 = vmax.f32 %v78, 0.0
  %v88 = vmax.f32 %v80, 0.0
  %v89 = vmax.f32 %v83, 0.0
  %v90 = vmax.f32 %v85, 0.0
  %v91 = vpack.c.bf16 %v88, %v87
  %v92 = vpack.c.bf16 %v90, %v89
  %v93 = vld [vmem:[%s3] sm:$0xf]
  %v94 = vld [vmem:[%s3 + $0x4] sm:$0xf]
  %v95 = vld [vmem:[%s3 + $0x8] sm:$0xf]
  %v96 = vld [vmem:[%s3 + $0xc] sm:$0xf]
  %v97 = vld [vmem:[%s3 + $0x10] sm:$0xf]
  %v98 = vld [vmem:[%s3 + $0x14] sm:$0xf]
  %v99 = vld [vmem:[%s4] sm:$0x1]
  %v101 = vperm.slane %v99, 0
  %v109 = vunpack.c.l.b16 %v93
  %v110 = vunpack.c.l.b16 %v94
  %v111 = vunpack.c.l.b16 %v95
  %v112 = vunpack.c.l.b16 %v96
  %v113 = vunpack.c.l.b16 %v97
  %v114 = vunpack.c.l.b16 %v98
  %v115 = vpack.c.b16 %v110, %v109
  %v116 = vpack.c.b16 %v112, %v111
  %v117 = vpack.c.b16 %v114, %v113
  %vm121 = vcmask 392192
  %v123 = vsel %vm121, %v91, 0
  %v126 = vsel %vm121, %v92, 0
  %128 = vmatpush.bf16.msra.mxu0 0
  %129 = vmatpush.bf16.msra.mxu0 0
  %130 = vmatpush.bf16.msra.mxu0 0
  %131 = vmatpush.bf16.msra.mxu0 0
  %132 = vmatpush.bf16.msra.mxu0 0
  %133 = vmatpush.bf16.msra.mxu0 %v117
  %134 = vmatpush.bf16.msra.mxu0 %v116
  %135 = vmatpush.bf16.msra.mxu0 %v115
  %136 = vmatmul.bf16.gmra.mxu0 %v123
  %v137 = vpop.f32.mrf.mxu0
  %v138 = vadd.f32 %v101, %v137
  %v139 = vpop.f32.mrf.mxu0
  %v140 = vadd.f32 %v101, %v139
  %141 = vmatmul.bf16.gmra.mxu0 %v126
  %v142 = vpop.f32.mrf.mxu0
  %v143 = vadd.f32 %v101, %v142
  %v144 = vpop.f32.mrf.mxu0
  %v145 = vadd.f32 %v101, %v144
  %146 = vdwg.mxu0
  %v147 = vunpack.c.l.bf16 %v27
  %v148 = vunpack.c.l.bf16 %v28
  %v149 = vunpack.c.l.bf16 %v29
  %v150 = vunpack.c.l.bf16 %v30
  %v151 = vadd.f32 %v138, %v147
  %v152 = vadd.f32 %v140, %v148
  %v153 = vadd.f32 %v143, %v149
  %v154 = vadd.f32 %v145, %v150
  %v155 = vsel %vm61, %v151, 0.0
  %156 = vadd.xlane.f32.xlu0 %v155
  %v157 = vpop.xlane.xlu0 %156
  %v158 = vsel %vm61, %v152, 0.0
  %159 = vadd.xlane.f32.xlu0 %v158
  %v160 = vpop.xlane.xlu0 %159
  %v161 = vsel %vm61, %v153, 0.0
  %162 = vadd.xlane.f32.xlu0 %v161
  %v163 = vpop.xlane.xlu0 %162
  %v164 = vsel %vm61, %v154, 0.0
  %165 = vadd.xlane.f32.xlu0 %v164
  %v166 = vpop.xlane.xlu0 %165
  %v167 = vrcp.pop 32.0
  %v168 = vmul.f32 32.0, %v167
  %v169 = vsub.f32 1.0, %v168
  %v170 = vmul.f32 %v167, %v169
  %v171 = vadd.f32 %v167, %v170
  %vm172 = vweird.f32 %v167
  %v173 = vsel %vm172, %v167, %v171
  %v174 = vmul.f32 %v157, %v173
  %v175 = vmul.f32 %v160, %v173
  %v176 = vmul.f32 %v163, %v173
  %v177 = vmul.f32 %v166, %v173
  %v178 = vsub.f32 %v151, %v174
  %v179 = vsub.f32 %v152, %v175
  %v180 = vsub.f32 %v153, %v176
  %v181 = vsub.f32 %v154, %v177
  %v182 = vmul.f32 %v178, %v178
  %v183 = vmul.f32 %v179, %v179
  %v184 = vmul.f32 %v180, %v180
  %v185 = vmul.f32 %v181, %v181
  %v186 = vsel %vm61, %v182, 0.0
  %187 = vadd.xlane.f32.xlu0 %v186
  %v188 = vpop.xlane.xlu0 %187
  %v189 = vsel %vm61, %v183, 0.0
  %190 = vadd.xlane.f32.xlu0 %v189
  %v191 = vpop.xlane.xlu0 %190
  %v192 = vsel %vm61, %v184, 0.0
  %193 = vadd.xlane.f32.xlu0 %v192
  %v194 = vpop.xlane.xlu0 %193
  %v195 = vsel %vm61, %v185, 0.0
  %196 = vadd.xlane.f32.xlu0 %v195
  %v197 = vpop.xlane.xlu0 %196
  %v198 = vmul.f32 %v188, %v173
  %v199 = vmul.f32 %v191, %v173
  %v200 = vmul.f32 %v194, %v173
  %v201 = vmul.f32 %v197, %v173
  %v202 = vadd.f32 %v198, 1e-05
  %v203 = vadd.f32 %v199, 1e-05
  %v204 = vadd.f32 %v200, 1e-05
  %v205 = vadd.f32 %v201, 1e-05
  %v206 = vrsqrt.pop %v202
  %v207 = vmul.f32 %v206, %v202
  %v208 = vmul.f32 %v207, %v206
  %v209 = vmul.f32 0.5, %v208
  %v210 = vsub.f32 1.5, %v209
  %v211 = vmul.f32 %v206, %v210
  %vm212 = vweird.f32 %v202
  %vm213 = vweird.f32 %v206
  %vm214 = vmor %vm212, %vm213
  %v215 = vsel %vm214, %v206, %v211
  %v216 = vrsqrt.pop %v203
  %v217 = vmul.f32 %v216, %v203
  %v218 = vmul.f32 %v217, %v216
  %v219 = vmul.f32 0.5, %v218
  %v220 = vsub.f32 1.5, %v219
  %v221 = vmul.f32 %v216, %v220
  %vm222 = vweird.f32 %v203
  %vm223 = vweird.f32 %v216
  %vm224 = vmor %vm222, %vm223
  %v225 = vsel %vm224, %v216, %v221
  %v226 = vrsqrt.pop %v204
  %v227 = vmul.f32 %v226, %v204
  %v228 = vmul.f32 %v227, %v226
  %v229 = vmul.f32 0.5, %v228
  %v230 = vsub.f32 1.5, %v229
  %v231 = vmul.f32 %v226, %v230
  %vm232 = vweird.f32 %v204
  %vm233 = vweird.f32 %v226
  %vm234 = vmor %vm232, %vm233
  %v235 = vsel %vm234, %v226, %v231
  %v236 = vrsqrt.pop %v205
  %v237 = vmul.f32 %v236, %v205
  %v238 = vmul.f32 %v237, %v236
  %v239 = vmul.f32 0.5, %v238
  %v240 = vsub.f32 1.5, %v239
  %v241 = vmul.f32 %v236, %v240
  %vm242 = vweird.f32 %v205
  %vm243 = vweird.f32 %v236
  %vm244 = vmor %vm242, %vm243
  %v245 = vsel %vm244, %v236, %v241
  %v246 = vmul.f32 %v178, %v215
  %v247 = vmul.f32 %v179, %v225
  %v248 = vmul.f32 %v180, %v235
  %v249 = vmul.f32 %v181, %v245
  %v250 = vld [vmem:[%s5] sm:$0x1]
  %v252 = vperm.slane %v250, 0
  %v254 = vmul.f32 %v246, %v252
  %v255 = vmul.f32 %v247, %v252
  %v256 = vmul.f32 %v248, %v252
  %v257 = vmul.f32 %v249, %v252
  %v258 = vld [vmem:[%s6] sm:$0x1]
  %v260 = vperm.slane %v258, 0
  %v262 = vadd.f32 %v254, %v260
  %v263 = vadd.f32 %v255, %v260
  %v264 = vadd.f32 %v256, %v260
  %v265 = vadd.f32 %v257, %v260
  %v266 = vpack.c.bf16 %v262, %v262
  %v267 = vpack.c.bf16 %v263, %v263
  %v268 = vpack.c.bf16 %v264, %v264
  %v269 = vpack.c.bf16 %v265, %v265
  %vm270 = vcmask 257024
  %271 = vst.msk [vmem:[%s7] sm:$0xf] %vm270, %v266
  %272 = vst.msk [vmem:[%s7 + $0x4] sm:$0xf] %vm270, %v267
  %273 = vst.msk [vmem:[%s7 + $0x8] sm:$0xf] %vm270, %v268
  %274 = vst.msk [vmem:[%s7 + $0xc] sm:$0xf] %vm270, %v269
  // Predicated region
  $region30: #{transformer_seq_forward.18} parent=0 // pred_check
    _
  $region31: #{transformer_seq_forward.18} parent=0 // pred_check_branch
    %276 = sbr.rel (0) target = $region33
  $region32: #{transformer_seq_forward.18} parent=0 // pred_region
    _
  $region33: #{transformer_seq_forward.18} parent=0 // pred_fallthru
    _
  // Predicated region
  $region34: #{transformer_seq_forward.18} parent=0 // pred_check
    _
  $region35: #{transformer_seq_forward.18} parent=0 // pred_check_branch
    %278 = sbr.rel (0) target = $region37
  $region36: #{transformer_seq_forward.18} parent=0 // pred_region
    _
  $region37: #{transformer_seq_forward.18} parent=0 // pred_fallthru
    _

// kernel: transformer_seq_forward.17
$region0: #{transformer_seq_forward.17}
  #allocation0 [shape = 'u32[]', space=smem, size = 0x4, offset = 0x4, fixed_abs, tag = 'smem constant byte address 0x4 - core index']
  #allocation1 [shape = 'u32[72,128]{1,0:T(1,128)}', space=vmem, size = 0x9000, scoped, tag = 'internal scratch']
  %s0 = inlined_call_operand.vmem [shape: bf16[32,32], index: 0, kind: input, shape index: {}]
  %s1 = inlined_call_operand.vmem [shape: bf16[32,32], index: 1, kind: input, shape index: {}]
  %s2 = inlined_call_operand.vmem [shape: bf16[32,32], index: 2, kind: input, shape index: {}]
  %s3 = inlined_call_operand.vmem [shape: f32[1,32], index: 3, kind: input, shape index: {}]
  %s4 = inlined_call_operand.vmem [shape: f32[1,32], index: 4, kind: input, shape index: {}]
  %s5 = inlined_call_operand.vmem [shape: bf16[32,32], index: 5, kind: output, shape index: {}]
  %s6 = sld [smem:[#allocation0]]
  $region30: #{transformer_seq_forward.17} parent=0
    _
  %s8 = ssub.s32 1, %s6
  %s9 = scalar_select 0, %s8, %s6
  // Predicated region
  $region2: #{transformer_seq_forward.17} parent=0 // pred_check
    _
  $region3: #{transformer_seq_forward.17} parent=0 // pred_check_branch
    %11 = sbr.rel (0) target = $region5
  $region4: #{transformer_seq_forward.17} parent=0 // pred_region
    _
  $region5: #{transformer_seq_forward.17} parent=0 // pred_fallthru
    _
  // Predicated region
  $region6: #{transformer_seq_forward.17} parent=0 // pred_check
    _
  $region7: #{transformer_seq_forward.17} parent=0 // pred_check_branch
    %13 = sbr.rel (0) target = $region9
  $region8: #{transformer_seq_forward.17} parent=0 // pred_region
    _
  $region9: #{transformer_seq_forward.17} parent=0 // pred_fallthru
    _
  // Predicated region
  $region10: #{transformer_seq_forward.17} parent=0 // pred_check
    _
  $region11: #{transformer_seq_forward.17} parent=0 // pred_check_branch
    %15 = sbr.rel (0) target = $region13
  $region12: #{transformer_seq_forward.17} parent=0 // pred_region
    _
  $region13: #{transformer_seq_forward.17} parent=0 // pred_fallthru
    _
  // Predicated region
  $region14: #{transformer_seq_forward.17} parent=0 // pred_check
    _
  $region15: #{transformer_seq_forward.17} parent=0 // pred_check_branch
    %17 = sbr.rel (0) target = $region17
  $region16: #{transformer_seq_forward.17} parent=0 // pred_region
    _
  $region17: #{transformer_seq_forward.17} parent=0 // pred_fallthru
    _
  // Predicated region
  $region18: #{transformer_seq_forward.17} parent=0 // pred_check
    _
  $region19: #{transformer_seq_forward.17} parent=0 // pred_check_branch
    %19 = sbr.rel (0) target = $region21
  $region20: #{transformer_seq_forward.17} parent=0 // pred_region
    _
  $region21: #{transformer_seq_forward.17} parent=0 // pred_fallthru
    _
  %v21 = vld [vmem:[%s0] sm:$0xf]
  %v22 = vld [vmem:[%s0 + $0x4] sm:$0xf]
  %v23 = vld [vmem:[%s0 + $0x8] sm:$0xf]
  %v24 = vld [vmem:[%s0 + $0xc] sm:$0xf]
  %v25 = vld [vmem:[%s1] sm:$0xf]
  %v26 = vld [vmem:[%s1 + $0x4] sm:$0xf]
  %v27 = vld [vmem:[%s1 + $0x8] sm:$0xf]
  %v28 = vld [vmem:[%s1 + $0xc] sm:$0xf]
  %v29 = vld [vmem:[%s2] sm:$0xf]
  %v30 = vld [vmem:[%s2 + $0x4] sm:$0xf]
  %v31 = vld [vmem:[%s2 + $0x8] sm:$0xf]
  %v32 = vld [vmem:[%s2 + $0xc] sm:$0xf]
  %v33 = vunpack.c.l.bf16 %v29
  %v34 = vunpack.c.l.bf16 %v30
  %v35 = vunpack.c.l.bf16 %v31
  %v36 = vunpack.c.l.bf16 %v32
  %v41 = vunpack.c.l.b16 %v21
  %v42 = vunpack.c.l.b16 %v22
  %v43 = vunpack.c.l.b16 %v23
  %v44 = vunpack.c.l.b16 %v24
  %v45 = vpack.c.b16 %v42, %v41
  %v46 = vpack.c.b16 %v44, %v43
  %v51 = vunpack.c.l.b16 %v25
  %v52 = vunpack.c.l.b16 %v26
  %v53 = vunpack.c.l.b16 %v27
  %v54 = vunpack.c.l.b16 %v28
  %v55 = vpack.c.b16 %v52, %v51
  %v56 = vpack.c.b16 %v54, %v53
  %vm59 = vcmask 261120
  %v61 = vsel %vm59, %v45, 0
  %v64 = vsel %vm59, %v46, 0
  %66 = vmatpush.bf16.msra.mxu0 0
  %67 = vmatpush.bf16.msra.mxu0 0
  %68 = vmatpush.bf16.msra.mxu0 0
  %69 = vmatpush.bf16.msra.mxu0 0
  %70 = vmatpush.bf16.msra.mxu0 0
  %71 = vmatpush.bf16.msra.mxu0 0
  %72 = vmatpush.bf16.msra.mxu0 %v56
  %73 = vmatpush.bf16.msra.mxu0 %v55
  %74 = vmatmul.bf16.gmra.mxu0 %v61
  %v75 = vpop.f32.mrf.mxu0
  %v76 = vadd.f32 %v33, %v75
  %v77 = vpop.f32.mrf.mxu0
  %v78 = vadd.f32 %v34, %v77
  %79 = vmatmul.bf16.gmra.mxu0 %v64
  %v80 = vpop.f32.mrf.mxu0
  %v81 = vadd.f32 %v35, %v80
  %v82 = vpop.f32.mrf.mxu0
  %v83 = vadd.f32 %v36, %v82
  %84 = vdwg.mxu0
  %v85 = vsel %vm59, %v76, 0.0
  %86 = vadd.xlane.f32.xlu0 %v85
  %v87 = vpop.xlane.xlu0 %86
  %v88 = vsel %vm59, %v78, 0.0
  %89 = vadd.xlane.f32.xlu0 %v88
  %v90 = vpop.xlane.xlu0 %89
  %v91 = vsel %vm59, %v81, 0.0
  %92 = vadd.xlane.f32.xlu0 %v91
  %v93 = vpop.xlane.xlu0 %92
  %v94 = vsel %vm59, %v83, 0.0
  %95 = vadd.xlane.f32.xlu0 %v94
  %v96 = vpop.xlane.xlu0 %95
  %v97 = vrcp.pop 32.0
  %v98 = vmul.f32 32.0, %v97
  %v99 = vsub.f32 1.0, %v98
  %v100 = vmul.f32 %v97, %v99
  %v101 = vadd.f32 %v97, %v100
  %vm102 = vweird.f32 %v97
  %v103 = vsel %vm102, %v97, %v101
  %v104 = vmul.f32 %v87, %v103
  %v105 = vmul.f32 %v90, %v103
  %v106 = vmul.f32 %v93, %v103
  %v107 = vmul.f32 %v96, %v103
  %v108 = vsub.f32 %v76, %v104
  %v109 = vsub.f32 %v78, %v105
  %v110 = vsub.f32 %v81, %v106
  %v111 = vsub.f32 %v83, %v107
  %v112 = vmul.f32 %v108, %v108
  %v113 = vmul.f32 %v109, %v109
  %v114 = vmul.f32 %v110, %v110
  %v115 = vmul.f32 %v111, %v111
  %v116 = vsel %vm59, %v112, 0.0
  %117 = vadd.xlane.f32.xlu0 %v116
  %v118 = vpop.xlane.xlu0 %117
  %v119 = vsel %vm59, %v113, 0.0
  %120 = vadd.xlane.f32.xlu0 %v119
  %v121 = vpop.xlane.xlu0 %120
  %v122 = vsel %vm59, %v114, 0.0
  %123 = vadd.xlane.f32.xlu0 %v122
  %v124 = vpop.xlane.xlu0 %123
  %v125 = vsel %vm59, %v115, 0.0
  %126 = vadd.xlane.f32.xlu0 %v125
  %v127 = vpop.xlane.xlu0 %126
  %v128 = vmul.f32 %v118, %v103
  %v129 = vmul.f32 %v121, %v103
  %v130 = vmul.f32 %v124, %v103
  %v131 = vmul.f32 %v127, %v103
  %v132 = vadd.f32 %v128, 1e-05
  %v133 = vadd.f32 %v129, 1e-05
  %v134 = vadd.f32 %v130, 1e-05
  %v135 = vadd.f32 %v131, 1e-05
  %v136 = vrsqrt.pop %v132
  %v137 = vmul.f32 %v136, %v132
  %v138 = vmul.f32 %v137, %v136
  %v139 = vmul.f32 0.5, %v138
  %v140 = vsub.f32 1.5, %v139
  %v141 = vmul.f32 %v136, %v140
  %vm142 = vweird.f32 %v132
  %vm143 = vweird.f32 %v136
  %vm144 = vmor %vm142, %vm143
  %v145 = vsel %vm144, %v136, %v141
  %v146 = vrsqrt.pop %v133
  %v147 = vmul.f32 %v146, %v133
  %v148 = vmul.f32 %v147, %v146
  %v149 = vmul.f32 0.5, %v148
  %v150 = vsub.f32 1.5, %v149
  %v151 = vmul.f32 %v146, %v150
  %vm152 = vweird.f32 %v133
  %vm153 = vweird.f32 %v146
  %vm154 = vmor %vm152, %vm153
  %v155 = vsel %vm154, %v146, %v151
  %v156 = vrsqrt.pop %v134
  %v157 = vmul.f32 %v156, %v134
  %v158 = vmul.f32 %v157, %v156
  %v159 = vmul.f32 0.5, %v158
  %v160 = vsub.f32 1.5, %v159
  %v161 = vmul.f32 %v156, %v160
  %vm162 = vweird.f32 %v134
  %vm163 = vweird.f32 %v156
  %vm164 = vmor %vm162, %vm163
  %v165 = vsel %vm164, %v156, %v161
  %v166 = vrsqrt.pop %v135
  %v167 = vmul.f32 %v166, %v135
  %v168 = vmul.f32 %v167, %v166
  %v169 = vmul.f32 0.5, %v168
  %v170 = vsub.f32 1.5, %v169
  %v171 = vmul.f32 %v166, %v170
  %vm172 = vweird.f32 %v135
  %vm173 = vweird.f32 %v166
  %vm174 = vmor %vm172, %vm173
  %v175 = vsel %vm174, %v166, %v171
  %v176 = vmul.f32 %v108, %v145
  %v177 = vmul.f32 %v109, %v155
  %v178 = vmul.f32 %v110, %v165
  %v179 = vmul.f32 %v111, %v175
  %v180 = vld [vmem:[%s3] sm:$0x1]
  %v182 = vperm.slane %v180, 0
  %v184 = vmul.f32 %v176, %v182
  %v185 = vmul.f32 %v177, %v182
  %v186 = vmul.f32 %v178, %v182
  %v187 = vmul.f32 %v179, %v182
  %v188 = vld [vmem:[%s4] sm:$0x1]
  %v190 = vperm.slane %v188, 0
  %v192 = vadd.f32 %v184, %v190
  %v193 = vadd.f32 %v185, %v190
  %v194 = vadd.f32 %v186, %v190
  %v195 = vadd.f32 %v187, %v190
  %v196 = vpack.c.bf16 %v192, %v192
  %v197 = vpack.c.bf16 %v193, %v193
  %v198 = vpack.c.bf16 %v194, %v194
  %v199 = vpack.c.bf16 %v195, %v195
  %vm200 = vcmask 257024
  %201 = vst.msk [vmem:[%s5] sm:$0xf] %vm200, %v196
  %202 = vst.msk [vmem:[%s5 + $0x4] sm:$0xf] %vm200, %v197
  %203 = vst.msk [vmem:[%s5 + $0x8] sm:$0xf] %vm200, %v198
  %204 = vst.msk [vmem:[%s5 + $0xc] sm:$0xf] %vm200, %v199
  // Predicated region
  $region22: #{transformer_seq_forward.17} parent=0 // pred_check
    _
  $region23: #{transformer_seq_forward.17} parent=0 // pred_check_branch
    %206 = sbr.rel (0) target = $region25
  $region24: #{transformer_seq_forward.17} parent=0 // pred_region
    _
  $region25: #{transformer_seq_forward.17} parent=0 // pred_fallthru
    _
  // Predicated region
  $region26: #{transformer_seq_forward.17} parent=0 // pred_check
    _
  $region27: #{transformer_seq_forward.17} parent=0 // pred_check_branch
    %208 = sbr.rel (0) target = $region29
  $region28: #{transformer_seq_forward.17} parent=0 // pred_region
    _
  $region29: #{transformer_seq_forward.17} parent=0 // pred_fallthru
    _

</llo_original>
